<compile_context>
chip_gen: v6e
topology: v6e:2x2x1
jax: 0.10.0
libtpu: 0.0.40
codegen_flags: <defaults>
</compile_context>

<pallas_src>
import functools

import jax
import jax.numpy as jnp
from jax.experimental import pallas as pl
from jax.experimental.pallas import tpu as pltpu

W0 = 1.0            # Sine(w0=1.0)
LEAKY_SLOPE = 0.01  # nn.LeakyReLU default


def _activate(x, no_sine):
    if no_sine:
        return jnp.where(x >= 0, x, LEAKY_SLOPE * x)
    return jnp.sin(W0 * x)


def _regressor_fused_kernel(x_ref, *refs, residual_flags, no_sine):
    """Run the full layer stack on one lane-dense (BB, C, TN) tile.

    x_ref           : (BB, C0, TN) feature tile (channels = sublanes, points = lanes)
    refs[:-1]       : per layer either (w, b) or (wy, wt, b); w* are (Cout, Cin),
                      b is (Cout, 1) so it broadcasts over the lane dim
    refs[-1]        : (BB, C_last, TN) output tile
    Intermediates (y, tmpy) never leave VMEM.
    """
    o_ref = refs[-1]
    p = refs[:-1]
    n_layers = len(residual_flags)
    BB = x_ref.shape[0]

    # Load the tiny resident weights once (shared across the BB batch loop).
    pv = [r[...].astype(jnp.float32) for r in p]

    for bb in range(BB):                       # static, small (usually 1)
        y = x_ref[bb].astype(jnp.float32)      # (C0, TN)
        tmpy = y
        idx = 0
        for l in range(n_layers):
            last = l == n_layers - 1
            if residual_flags[l]:
                wy, wt, b = pv[idx], pv[idx + 1], pv[idx + 2]
                idx += 3
                # concat([y, tmpy], channel) @ W^T  ==  Wy @ y + Wt @ tmpy
                acc = jnp.dot(wy, y, preferred_element_type=jnp.float32)
                acc = acc + jnp.dot(wt, tmpy, preferred_element_type=jnp.float32)
            else:
                w, b = pv[idx], pv[idx + 1]
                idx += 2
                acc = jnp.dot(w, y, preferred_element_type=jnp.float32)
            acc = acc + b                      # (Cout, 1) broadcasts over lanes
            y = acc if last else _activate(acc, no_sine)
        o_ref[bb] = y.astype(o_ref.dtype)


def init_regressor_params(key, filter_channels, no_residual=False):
    """Deterministic init mimicking PyTorch Conv1d default (U[-1/sqrt(fan_in), ..])."""
    params = []
    for l in range(len(filter_channels) - 1):
        if (not no_residual) and l != 0:
            cin = filter_channels[l] + filter_channels[0]
        else:
            cin = filter_channels[l]
        cout = filter_channels[l + 1]
        key, k_w, k_b = jax.random.split(key, 3)
        bound = 1.0 / float(cin) ** 0.5
        w = jax.random.uniform(k_w, (cout, cin), jnp.float32, -bound, bound)
        b = jax.random.uniform(k_b, (cout,), jnp.float32, -bound, bound)
        params.append((w, b))
    return params


def prepare_regressor_params(params, *, no_residual=False, dtype=jnp.float32):
    """One-time prep: split residual weights into (Wy, Wt), reshape biases to
    (Cout, 1). Returns (flat_params_tuple, residual_flags_tuple)."""
    c0 = params[0][0].shape[1]
    flat = []
    flags = []
    for l, (w, b) in enumerate(params):
        w = jnp.asarray(w, dtype)
        b2 = jnp.asarray(b, dtype).reshape(-1, 1)
        if no_residual or l == 0:
            flat.extend([w, b2])
            flags.append(False)
        else:
            cy = w.shape[1] - c0           # channels coming from y (rest from tmpy)
            flat.extend([w[:, :cy], w[:, cy:], b2])
            flags.append(True)
    return tuple(flat), tuple(flags)


def _default_lane_cap():
    """Generation-aware lane-tile cap: ~16K on v7x (64 MiB VMEM), 32K elsewhere."""
    try:
        vmem = pltpu.get_tpu_info().vmem_capacity_bytes
    except Exception:
        vmem = 128 << 20
    return 16384 if vmem <= (64 << 20) else 32768


def regressor_forward(prepared, feature, *, no_sine=False, tn=None, bb=None,
                      out_dtype=None):
    """prepared = (flat_params, residual_flags); feature: (B, C0, N) NCL.
    Returns (B, C_last, N) in `out_dtype` (default: feature.dtype).
    Pass a bf16 feature (and/or out_dtype=jnp.bfloat16) for bf16 HBM streaming;
    all math is done in f32 inside the kernel."""
    flat, flags = prepared
    B, C0, N = feature.shape
    c_last = flat[-1].shape[0]             # last bias has shape (C_last, 1)
    out_dtype = feature.dtype if out_dtype is None else out_dtype

    # ---- lane tile over the points dimension --------------------------------
    cap = _default_lane_cap()
    if tn is not None:
        cap = tn if tn >= N else max(128, (tn // 128) * 128)
    TN = N if N <= cap else cap            # full extent, or a multiple of 128
    n_tiles = pl.cdiv(N, TN)               # ragged final block handled by Pallas

    # ---- batch blocking (amortize per-step overhead when N is small) --------
    in_bytes = jnp.dtype(feature.dtype).itemsize
    o_bytes = jnp.dtype(out_dtype).itemsize
    step_bytes = (C0 * in_bytes + c_last * o_bytes) * TN
    if bb is not None:
        BB = max(1, min(B, int(bb)))
    elif n_tiles == 1 and step_bytes < (1 << 20):
        BB = int(min(B, max(1, (1 << 20) // max(step_bytes, 1))))
    else:
        BB = 1

    # Keep at least 2 grid steps so both v7x TensorCores get work.
    if pl.cdiv(B, BB) * n_tiles == 1:
        if B >= 2:
            BB = (B + 1) // 2
        elif N >= 256:
            TN = ((-(-N // 2) + 127) // 128) * 128
            n_tiles = pl.cdiv(N, TN)
    # Keep BB a divisor of B (avoids ragged batch blocks; cheap to do).
    while B % BB != 0:
        BB -= 1

    kern = functools.partial(_regressor_fused_kernel,
                             residual_flags=flags, no_sine=no_sine)

    x_spec = pl.BlockSpec((BB, C0, TN), lambda b, n: (b, 0, n))
    # Small weights/biases: full-array blocks, resident in VMEM for every tile.
    param_specs = [pl.BlockSpec(a.shape, lambda b, n: (0, 0)) for a in flat]
    out_spec = pl.BlockSpec((BB, c_last, TN), lambda b, n: (b, 0, n))

    out = pl.pallas_call(
        kern,
        out_shape=jax.ShapeDtypeStruct((B, c_last, N), out_dtype),
        grid=(pl.cdiv(B, BB), n_tiles),
        in_specs=[x_spec] + param_specs,
        out_specs=out_spec,
        compiler_params=pltpu.CompilerParams(
            dimension_semantics=("parallel", "parallel")),
    )(feature, *flat)
    return out


def regressor_reference(params, feature, *, no_residual=False, no_sine=False):
    """Plain-JAX reference matching the PyTorch forward exactly."""
    y = feature
    tmpy = feature
    n_layers = len(params)
    for i, (w, b) in enumerate(params):
        x_in = y if (no_residual or i == 0) else jnp.concatenate([y, tmpy], axis=1)
        # Conv1d kernel_size=1: out[b,o,n] = sum_c W[o,c] * x[b,c,n] + bias[o]
        y = jnp.einsum('oc,bcn->bon', w, x_in) + b[None, :, None]
        if i != n_layers - 1:
            if no_sine:
                y = jnp.where(y >= 0, y, LEAKY_SLOPE * y)
            else:
                y = jnp.sin(W0 * y)
    return y


if __name__ == "__main__":
    key = jax.random.PRNGKey(0)
    k_feat, k_feat2, k_feat3, k_params = jax.random.split(key, 4)

    filter_channels = [4, 32, 32, 1]
    B, C0, N = 2, filter_channels[0], 16
    feature = jax.random.normal(k_feat, (B, C0, N), jnp.float32)

    # Residual + sine variant (default module config), default (large) tile.
    params = init_regressor_params(k_params, filter_channels, no_residual=False)
    prepared = prepare_regressor_params(params, no_residual=False)

    out = jax.block_until_ready(regressor_forward(prepared, feature, no_sine=False))
    ref = regressor_reference(params, feature, no_residual=False, no_sine=False)
    assert out.shape == (B, filter_channels[-1], N), out.shape
    assert jnp.allclose(out, ref, atol=1e-4, rtol=1e-4), \
        f"max err {jnp.max(jnp.abs(out - ref))}"

    # Ragged multi-tile path (N % TN != 0) with NO wrapper pad / slice.
    N2 = 300
    feature2 = jax.random.normal(k_feat2, (B, C0, N2), jnp.float32)
    out2 = jax.block_until_ready(
        regressor_forward(prepared, feature2, no_sine=False, tn=128))
    ref2 = regressor_reference(params, feature2, no_residual=False, no_sine=False)
    assert out2.shape == (B, filter_channels[-1], N2), out2.shape
    assert jnp.allclose(out2, ref2, atol=1e-4, rtol=1e-4), \
        f"max err {jnp.max(jnp.abs(out2 - ref2))}"

    # No-residual + LeakyReLU variant.
    params_nr = init_regressor_params(k_params, filter_channels, no_residual=True)
    prepared_nr = prepare_regressor_params(params_nr, no_residual=True)
    out3 = jax.block_until_ready(
        regressor_forward(prepared_nr, feature, no_sine=True))
    ref3 = regressor_reference(params_nr, feature, no_residual=True, no_sine=True)
    assert jnp.allclose(out3, ref3, atol=1e-4, rtol=1e-4), \
        f"max err {jnp.max(jnp.abs(out3 - ref3))}"

    # Many-small-batches regime: batch-blocked tiles (BB > 1, in-kernel loop).
    B4 = 8
    feature4 = jax.random.normal(k_feat3, (B4, C0, N), jnp.float32)
    out4 = jax.block_until_ready(regressor_forward(prepared, feature4, no_sine=False))
    ref4 = regressor_reference(params, feature4, no_residual=False, no_sine=False)
    assert out4.shape == (B4, filter_channels[-1], N), out4.shape
    assert jnp.allclose(out4, ref4, atol=1e-4, rtol=1e-4), \
        f"max err {jnp.max(jnp.abs(out4 - ref4))}"

    # bf16 activation streaming (f32 weights + f32 accumulation inside kernel).
    feature_bf16 = feature.astype(jnp.bfloat16)
    out5 = jax.block_until_ready(
        regressor_forward(prepared, feature_bf16, no_sine=False))
    assert out5.dtype == jnp.bfloat16
    assert jnp.allclose(out5.astype(jnp.float32), ref, atol=5e-2, rtol=5e-2), \
        f"max err {jnp.max(jnp.abs(out5.astype(jnp.float32) - ref))}"

    print("KERNEL_OK")
</pallas_src>

<mosaic_0001>
module attributes {stable_mosaic.version = 11 : i64} {
  func.func @_regressor_fused_kernel(%arg0: i32, %arg1: i32, %arg2: memref<1x4x16xf32, #tpu.memory_space<vmem>>, %arg3: memref<32x4xf32, #tpu.memory_space<vmem>>, %arg4: memref<32x1xf32, #tpu.memory_space<vmem>>, %arg5: memref<32x32xf32, #tpu.memory_space<vmem>>, %arg6: memref<32x4xf32, #tpu.memory_space<vmem>>, %arg7: memref<32x1xf32, #tpu.memory_space<vmem>>, %arg8: memref<1x32xf32, #tpu.memory_space<vmem>>, %arg9: memref<1x4xf32, #tpu.memory_space<vmem>>, %arg10: memref<1x1xf32, #tpu.memory_space<vmem>>, %arg11: memref<1x1x16xf32, #tpu.memory_space<vmem>>) attributes {dimension_semantics = [#tpu.dimension_semantics<parallel>, #tpu.dimension_semantics<parallel>], iteration_bounds = array<i64: 2, 1>, scalar_prefetch = 0 : i64, scratch_operands = 0 : i64, tpu.core_type = #tpu.core_type<tc>, window_params = [{transform_indices = @transform_0, window_bounds = array<i64: 1, 4, 16>}, {pipeline_mode = #tpu.pipeline_mode<synchronous>, transform_indices = @transform_1, window_bounds = array<i64: 32, 4>}, {pipeline_mode = #tpu.pipeline_mode<synchronous>, transform_indices = @transform_2, window_bounds = array<i64: 32, 1>}, {pipeline_mode = #tpu.pipeline_mode<synchronous>, transform_indices = @transform_3, window_bounds = array<i64: 32, 32>}, {pipeline_mode = #tpu.pipeline_mode<synchronous>, transform_indices = @transform_4, window_bounds = array<i64: 32, 4>}, {pipeline_mode = #tpu.pipeline_mode<synchronous>, transform_indices = @transform_5, window_bounds = array<i64: 32, 1>}, {pipeline_mode = #tpu.pipeline_mode<synchronous>, transform_indices = @transform_6, window_bounds = array<i64: 1, 32>}, {pipeline_mode = #tpu.pipeline_mode<synchronous>, transform_indices = @transform_7, window_bounds = array<i64: 1, 4>}, {pipeline_mode = #tpu.pipeline_mode<synchronous>, transform_indices = @transform_8, window_bounds = array<i64: 1, 1>}, {transform_indices = @transform_9, window_bounds = array<i64: 1, 1, 16>}]} {
    %c0 = arith.constant 0 : index
    %c0_0 = arith.constant 0 : index
    %0 = vector.load %arg3[%c0, %c0_0] : memref<32x4xf32, #tpu.memory_space<vmem>>, vector<32x4xf32>
    %c0_1 = arith.constant 0 : index
    %c0_2 = arith.constant 0 : index
    %1 = vector.load %arg4[%c0_1, %c0_2] : memref<32x1xf32, #tpu.memory_space<vmem>>, vector<32x1xf32>
    %c0_3 = arith.constant 0 : index
    %c0_4 = arith.constant 0 : index
    %2 = vector.load %arg5[%c0_3, %c0_4] : memref<32x32xf32, #tpu.memory_space<vmem>>, vector<32x32xf32>
    %c0_5 = arith.constant 0 : index
    %c0_6 = arith.constant 0 : index
    %3 = vector.load %arg6[%c0_5, %c0_6] : memref<32x4xf32, #tpu.memory_space<vmem>>, vector<32x4xf32>
    %c0_7 = arith.constant 0 : index
    %c0_8 = arith.constant 0 : index
    %4 = vector.load %arg7[%c0_7, %c0_8] : memref<32x1xf32, #tpu.memory_space<vmem>>, vector<32x1xf32>
    %c0_9 = arith.constant 0 : index
    %c0_10 = arith.constant 0 : index
    %5 = vector.load %arg8[%c0_9, %c0_10] : memref<1x32xf32, #tpu.memory_space<vmem>>, vector<1x32xf32>
    %c0_11 = arith.constant 0 : index
    %c0_12 = arith.constant 0 : index
    %6 = vector.load %arg9[%c0_11, %c0_12] : memref<1x4xf32, #tpu.memory_space<vmem>>, vector<1x4xf32>
    %c0_13 = arith.constant 0 : index
    %c0_14 = arith.constant 0 : index
    %7 = vector.load %arg10[%c0_13, %c0_14] : memref<1x1xf32, #tpu.memory_space<vmem>>, vector<1x1xf32>
    %c0_15 = arith.constant 0 : index
    %c0_16 = arith.constant 0 : index
    %c0_17 = arith.constant 0 : index
    %8 = vector.load %arg2[%c0_15, %c0_16, %c0_17] : memref<1x4x16xf32, #tpu.memory_space<vmem>>, vector<1x4x16xf32>
    %9 = vector.shape_cast %8 : vector<1x4x16xf32> to vector<4x16xf32>
    %cst = arith.constant dense<0.000000e+00> : vector<32x16xf32>
    %10 = tpu.matmul %0, %9, %cst {dimension_numbers = #tpu.dot_dimension_numbers<[1], [0], [0], [1], [0, 0, 1, 1], [], []>} : vector<32x4xf32>, vector<4x16xf32>, vector<32x16xf32> -> vector<32x16xf32>
    %11 = vector.broadcast %1 : vector<32x1xf32> to vector<32x16xf32>
    %12 = arith.addf %10, %11 : vector<32x16xf32>
    %cst_18 = arith.constant 1.000000e+00 : f32
    %13 = vector.broadcast %cst_18 : f32 to vector<32x16xf32>
    %14 = arith.mulf %13, %12 : vector<32x16xf32>
    %15 = math.sin %14 : vector<32x16xf32>
    %cst_19 = arith.constant dense<0.000000e+00> : vector<32x16xf32>
    %16 = tpu.matmul %2, %15, %cst_19 {dimension_numbers = #tpu.dot_dimension_numbers<[1], [0], [0], [1], [0, 0, 1, 1], [], []>} : vector<32x32xf32>, vector<32x16xf32>, vector<32x16xf32> -> vector<32x16xf32>
    %cst_20 = arith.constant dense<0.000000e+00> : vector<32x16xf32>
    %17 = tpu.matmul %3, %9, %cst_20 {dimension_numbers = #tpu.dot_dimension_numbers<[1], [0], [0], [1], [0, 0, 1, 1], [], []>} : vector<32x4xf32>, vector<4x16xf32>, vector<32x16xf32> -> vector<32x16xf32>
    %18 = arith.addf %16, %17 : vector<32x16xf32>
    %19 = vector.broadcast %4 : vector<32x1xf32> to vector<32x16xf32>
    %20 = arith.addf %18, %19 : vector<32x16xf32>
    %cst_21 = arith.constant 1.000000e+00 : f32
    %21 = vector.broadcast %cst_21 : f32 to vector<32x16xf32>
    %22 = arith.mulf %21, %20 : vector<32x16xf32>
    %23 = math.sin %22 : vector<32x16xf32>
    %cst_22 = arith.constant dense<0.000000e+00> : vector<1x16xf32>
    %24 = tpu.matmul %5, %23, %cst_22 {dimension_numbers = #tpu.dot_dimension_numbers<[1], [0], [0], [1], [0, 0, 1, 1], [], []>} : vector<1x32xf32>, vector<32x16xf32>, vector<1x16xf32> -> vector<1x16xf32>
    %cst_23 = arith.constant dense<0.000000e+00> : vector<1x16xf32>
    %25 = tpu.matmul %6, %9, %cst_23 {dimension_numbers = #tpu.dot_dimension_numbers<[1], [0], [0], [1], [0, 0, 1, 1], [], []>} : vector<1x4xf32>, vector<4x16xf32>, vector<1x16xf32> -> vector<1x16xf32>
    %26 = arith.addf %24, %25 : vector<1x16xf32>
    %27 = vector.broadcast %7 : vector<1x1xf32> to vector<1x16xf32>
    %28 = arith.addf %26, %27 : vector<1x16xf32>
    %c0_24 = arith.constant 0 : index
    %c0_25 = arith.constant 0 : index
    %c0_26 = arith.constant 0 : index
    %29 = vector.load %arg11[%c0_24, %c0_25, %c0_26] : memref<1x1x16xf32, #tpu.memory_space<vmem>>, vector<1x1x16xf32>
    %30 = vector.shape_cast %29 : vector<1x1x16xf32> to vector<1x16xf32>
    %31 = vector.shape_cast %28 : vector<1x16xf32> to vector<1x1x16xf32>
    tpu.vector_store %arg11[%c0_24, %c0_25, %c0_26], %31 {strides = array<i32>} : memref<1x1x16xf32, #tpu.memory_space<vmem>>, vector<1x1x16xf32>,
    return
  }
  func.func @transform_0(%arg0: i32, %arg1: i32) -> (i32, i32, i32) {
    %c0_i32 = arith.constant 0 : i32
    %c0_i32_0 = arith.constant 0 : i32
    return %arg0, %c0_i32, %arg1 : i32, i32, i32
  }
  func.func @transform_1(%arg0: i32, %arg1: i32) -> (i32, i32) {
    %c0_i32 = arith.constant 0 : i32
    %c0_i32_0 = arith.constant 0 : i32
    %c0_i32_1 = arith.constant 0 : i32
    return %c0_i32, %c0_i32_0 : i32, i32
  }
  func.func @transform_2(%arg0: i32, %arg1: i32) -> (i32, i32) {
    %c0_i32 = arith.constant 0 : i32
    %c0_i32_0 = arith.constant 0 : i32
    %c0_i32_1 = arith.constant 0 : i32
    return %c0_i32, %c0_i32_0 : i32, i32
  }
  func.func @transform_3(%arg0: i32, %arg1: i32) -> (i32, i32) {
    %c0_i32 = arith.constant 0 : i32
    %c0_i32_0 = arith.constant 0 : i32
    %c0_i32_1 = arith.constant 0 : i32
    return %c0_i32, %c0_i32_0 : i32, i32
  }
  func.func @transform_4(%arg0: i32, %arg1: i32) -> (i32, i32) {
    %c0_i32 = arith.constant 0 : i32
    %c0_i32_0 = arith.constant 0 : i32
    %c0_i32_1 = arith.constant 0 : i32
    return %c0_i32, %c0_i32_0 : i32, i32
  }
  func.func @transform_5(%arg0: i32, %arg1: i32) -> (i32, i32) {
    %c0_i32 = arith.constant 0 : i32
    %c0_i32_0 = arith.constant 0 : i32
    %c0_i32_1 = arith.constant 0 : i32
    return %c0_i32, %c0_i32_0 : i32, i32
  }
  func.func @transform_6(%arg0: i32, %arg1: i32) -> (i32, i32) {
    %c0_i32 = arith.constant 0 : i32
    %c0_i32_0 = arith.constant 0 : i32
    %c0_i32_1 = arith.constant 0 : i32
    return %c0_i32, %c0_i32_0 : i32, i32
  }
  func.func @transform_7(%arg0: i32, %arg1: i32) -> (i32, i32) {
    %c0_i32 = arith.constant 0 : i32
    %c0_i32_0 = arith.constant 0 : i32
    %c0_i32_1 = arith.constant 0 : i32
    return %c0_i32, %c0_i32_0 : i32, i32
  }
  func.func @transform_8(%arg0: i32, %arg1: i32) -> (i32, i32) {
    %c0_i32 = arith.constant 0 : i32
    %c0_i32_0 = arith.constant 0 : i32
    %c0_i32_1 = arith.constant 0 : i32
    return %c0_i32, %c0_i32_0 : i32, i32
  }
  func.func @transform_9(%arg0: i32, %arg1: i32) -> (i32, i32, i32) {
    %c0_i32 = arith.constant 0 : i32
    %c0_i32_0 = arith.constant 0 : i32
    return %arg0, %c0_i32, %arg1 : i32, i32, i32
  }
}

</mosaic_0001>

<llo_original>
// kernel: tpu_custom_call.1
$region0: #{tpu_custom_call.1}
  #allocation0 [shape = 'u32[]', space=smem, size = 0x4, offset = 0x4, fixed_abs, tag = 'smem constant byte address 0x4 - core index']
  #allocation1 [shape = 'u32[144,128]{1,0:T(1,128)}', space=vmem, size = 0x12000, scoped, tag = 'internal scratch']
  #allocation2 [shape = 'f32[1,1]{1,0:T(1,128)S(1)}', space=vmem, size = 0x200, scoped, tag = 'scoped memory for tpu_custom_call.1']
  %s0 = inlined_call_operand.vmem [shape: f32[2,4,16], index: 0, kind: input, shape index: {}]
  %s1 = inlined_call_operand.vmem [shape: f32[32,4], index: 1, kind: input, shape index: {}]
  %s2 = inlined_call_operand.vmem [shape: f32[32,1], index: 2, kind: input, shape index: {}]
  %s3 = inlined_call_operand.vmem [shape: f32[32,32], index: 3, kind: input, shape index: {}]
  %s4 = inlined_call_operand.vmem [shape: f32[32,4], index: 4, kind: input, shape index: {}]
  %s5 = inlined_call_operand.vmem [shape: f32[32,1], index: 5, kind: input, shape index: {}]
  %s6 = inlined_call_operand.vmem [shape: f32[1,32], index: 6, kind: input, shape index: {}]
  %s7 = inlined_call_operand.vmem [shape: f32[1,4], index: 7, kind: input, shape index: {}]
  %s8 = inlined_call_operand.<no memory space> [shape: f32[1,1], index: 8, kind: input, shape index: {}]
  %s9 = inlined_call_operand.hbm [shape: f32[2,1,16], index: 9, kind: output, shape index: {}]
  %s10 = sld [smem:[#allocation0]]
  $region69: #{tpu_custom_call.1} parent=0
    _
  %s12 = ssub.s32 1, %s10
  %s13 = scalar_select 0, %s12, %s10
  %v14 = vstv %s8
  %15 = vst [vmem:[#allocation2] sm:$0x1] %v14
  $region1: #{tpu_custom_call.1} parent=0
    #allocation3 [shape = 'u8[1024]{0}', space=vmem, size = 0x400, scoped, tag = 'output window, operand 0']
    #allocation4 [shape = 's32[2]{0}', space=sflag, size = 0x8, scoped, tag = 'scoped memory for tpu_custom_call.1']
    %16 = vsyncpa [#allocation4], 0
    %s17 = scalar_lea.sflag [#allocation4], 1
    %18 = vsyncpa %s17, 0
    loop: start=0, step=1, limit=4
    $region2: #{tpu_custom_call.1} parent=1 // loop_pre_header
      _
    $region3: #{tpu_custom_call.1} parent=1 // loop_header
      %s20 = sphi 0, %s24
      %p21 = scmp.ge.s32.totalorder %s20, 4
      %s27 = sphi 0, %s39
      %s28 = sphi 0, %s35
      %s29 = sphi 0, %s27
      %s30 = sphi 0, %s28
      %s31 = sphi 0, %s29
      %s32 = sphi 0, %s30
      %s44 = sphi 0, %s46
      %s47 = sphi 0, %s44
      %s48 = sphi 0, %s47
      %s64 = sphi 0, %s48
      %s68 = sphi 0, %s68
      %s70 = sphi 0, %s68
      %s71 = sphi 0, %s70
      %s85 = sphi 0, %s71
      %s89 = sphi 0, %s89
      %s91 = sphi 0, %s89
      %s92 = sphi 0, %s91
      %s106 = sphi 0, %s92
      %s110 = sphi 0, %s110
      %s112 = sphi 0, %s110
      %s113 = sphi 0, %s112
      %s127 = sphi 0, %s113
      %s131 = sphi 0, %s131
      %s133 = sphi 0, %s131
      %s134 = sphi 0, %s133
      %s148 = sphi 0, %s134
      %s152 = sphi 0, %s152
      %s154 = sphi 0, %s152
      %s155 = sphi 0, %s154
      %s169 = sphi 0, %s155
      %s173 = sphi 0, %s173
      %s175 = sphi 0, %s173
      %s176 = sphi 0, %s175
      %s190 = sphi 0, %s176
      %s194 = sphi 0, %s194
      %s196 = sphi 0, %s194
      %s197 = sphi 0, %s196
      %s211 = sphi 0, %s197
      %s215 = sphi 0, %s215
      %s217 = sphi 0, %s215
      %s218 = sphi 0, %s217
      %s232 = sphi 0, %s218
      %s240 = sphi 0, %s242
      %s243 = sphi 0, %s240
      %s244 = sphi 0, %s243
      %s260 = sphi 0, %s244
    $region4: #{tpu_custom_call.1} parent=1 // loop_header_branch
      %23 = sbr.rel (%p21) target = $region8
    $region5: #{tpu_custom_call.1} parent=1 // loop_body
      %s25 = ssub.s32 %s20, 1
      %s26 = ssub.s32 %s20, 2
      %s33 = sadd.s32 1, %s28
      %p34 = scmp.ge.s32.totalorder %s33, 1
      %s35 = scalar_select %p34, 0, %s33
      %s36 = sadd.s32 1, %s27
      %s37 = scalar_select %p34, %s36, %s27
      %p38 = scmp.ge.s32.totalorder %s37, 2
      %s39 = scalar_select %p38, 0, %s37
      %s40 = ssub.s32 %s27, %s39
      %s41 = ssub.s32 %s28, %s35
      %s42 = sor.u32 %s40, %s41
      %p43 = scmp.eq.s32.totalorder %s42, 0
      %s45 = sadd.s32 %s44, 1
      %s46 = scalar_select %p43, %s44, %s45
      %p49 = pneg %p43
      %p50 = scmp.eq.s32.totalorder %s20, 1
      %p51 = por %p49, %p50
      %p52 = scmp.ne.s32.totalorder %s44, %s47
      %p53 = scmp.eq.s32.totalorder %s20, 0
      %p54 = por %p52, %p53
      %p55 = scmp.ne.s32.totalorder %s44, %s47
      %p56 = scmp.eq.s32.totalorder %s25, 1
      %p57 = por %p55, %p56
      %p58 = scmp.ne.s32.totalorder %s47, %s48
      %p59 = scmp.eq.s32.totalorder %s25, 0
      %p60 = por %p58, %p59
      %p61 = scmp.ne.s32.totalorder %s47, %s48
      %p62 = scmp.eq.s32.totalorder %s26, 1
      %p63 = por %p61, %p62
      %p65 = scmp.ne.s32.totalorder %s48, %s64
      %p66 = scmp.eq.s32.totalorder %s26, 0
      %p67 = por %p65, %p66
      %s69 = sadd.s32 %s68, 1
      %p72 = scmp.eq.s32.totalorder %s20, 1
      %p73 = scmp.ne.s32.totalorder %s68, %s70
      %p74 = scmp.eq.s32.totalorder %s20, 0
      %p75 = por %p73, %p74
      %p76 = scmp.ne.s32.totalorder %s68, %s70
      %p77 = scmp.eq.s32.totalorder %s25, 1
      %p78 = por %p76, %p77
      %p79 = scmp.ne.s32.totalorder %s70, %s71
      %p80 = scmp.eq.s32.totalorder %s25, 0
      %p81 = por %p79, %p80
      %p82 = scmp.ne.s32.totalorder %s70, %s71
      %p83 = scmp.eq.s32.totalorder %s26, 1
      %p84 = por %p82, %p83
      %p86 = scmp.ne.s32.totalorder %s71, %s85
      %p87 = scmp.eq.s32.totalorder %s26, 0
      %p88 = por %p86, %p87
      %s90 = sadd.s32 %s89, 1
      %p93 = scmp.eq.s32.totalorder %s20, 1
      %p94 = scmp.ne.s32.totalorder %s89, %s91
      %p95 = scmp.eq.s32.totalorder %s20, 0
      %p96 = por %p94, %p95
      %p97 = scmp.ne.s32.totalorder %s89, %s91
      %p98 = scmp.eq.s32.totalorder %s25, 1
      %p99 = por %p97, %p98
      %p100 = scmp.ne.s32.totalorder %s91, %s92
      %p101 = scmp.eq.s32.totalorder %s25, 0
      %p102 = por %p100, %p101
      %p103 = scmp.ne.s32.totalorder %s91, %s92
      %p104 = scmp.eq.s32.totalorder %s26, 1
      %p105 = por %p103, %p104
      %p107 = scmp.ne.s32.totalorder %s92, %s106
      %p108 = scmp.eq.s32.totalorder %s26, 0
      %p109 = por %p107, %p108
      %s111 = sadd.s32 %s110, 1
      %p114 = scmp.eq.s32.totalorder %s20, 1
      %p115 = scmp.ne.s32.totalorder %s110, %s112
      %p116 = scmp.eq.s32.totalorder %s20, 0
      %p117 = por %p115, %p116
      %p118 = scmp.ne.s32.totalorder %s110, %s112
      %p119 = scmp.eq.s32.totalorder %s25, 1
      %p120 = por %p118, %p119
      %p121 = scmp.ne.s32.totalorder %s112, %s113
      %p122 = scmp.eq.s32.totalorder %s25, 0
      %p123 = por %p121, %p122
      %p124 = scmp.ne.s32.totalorder %s112, %s113
      %p125 = scmp.eq.s32.totalorder %s26, 1
      %p126 = por %p124, %p125
      %p128 = scmp.ne.s32.totalorder %s113, %s127
      %p129 = scmp.eq.s32.totalorder %s26, 0
      %p130 = por %p128, %p129
      %s132 = sadd.s32 %s131, 1
      %p135 = scmp.eq.s32.totalorder %s20, 1
      %p136 = scmp.ne.s32.totalorder %s131, %s133
      %p137 = scmp.eq.s32.totalorder %s20, 0
      %p138 = por %p136, %p137
      %p139 = scmp.ne.s32.totalorder %s131, %s133
      %p140 = scmp.eq.s32.totalorder %s25, 1
      %p141 = por %p139, %p140
      %p142 = scmp.ne.s32.totalorder %s133, %s134
      %p143 = scmp.eq.s32.totalorder %s25, 0
      %p144 = por %p142, %p143
      %p145 = scmp.ne.s32.totalorder %s133, %s134
      %p146 = scmp.eq.s32.totalorder %s26, 1
      %p147 = por %p145, %p146
      %p149 = scmp.ne.s32.totalorder %s134, %s148
      %p150 = scmp.eq.s32.totalorder %s26, 0
      %p151 = por %p149, %p150
      %s153 = sadd.s32 %s152, 1
      %p156 = scmp.eq.s32.totalorder %s20, 1
      %p157 = scmp.ne.s32.totalorder %s152, %s154
      %p158 = scmp.eq.s32.totalorder %s20, 0
      %p159 = por %p157, %p158
      %p160 = scmp.ne.s32.totalorder %s152, %s154
      %p161 = scmp.eq.s32.totalorder %s25, 1
      %p162 = por %p160, %p161
      %p163 = scmp.ne.s32.totalorder %s154, %s155
      %p164 = scmp.eq.s32.totalorder %s25, 0
      %p165 = por %p163, %p164
      %p166 = scmp.ne.s32.totalorder %s154, %s155
      %p167 = scmp.eq.s32.totalorder %s26, 1
      %p168 = por %p166, %p167
      %p170 = scmp.ne.s32.totalorder %s155, %s169
      %p171 = scmp.eq.s32.totalorder %s26, 0
      %p172 = por %p170, %p171
      %s174 = sadd.s32 %s173, 1
      %p177 = scmp.eq.s32.totalorder %s20, 1
      %p178 = scmp.ne.s32.totalorder %s173, %s175
      %p179 = scmp.eq.s32.totalorder %s20, 0
      %p180 = por %p178, %p179
      %p181 = scmp.ne.s32.totalorder %s173, %s175
      %p182 = scmp.eq.s32.totalorder %s25, 1
      %p183 = por %p181, %p182
      %p184 = scmp.ne.s32.totalorder %s175, %s176
      %p185 = scmp.eq.s32.totalorder %s25, 0
      %p186 = por %p184, %p185
      %p187 = scmp.ne.s32.totalorder %s175, %s176
      %p188 = scmp.eq.s32.totalorder %s26, 1
      %p189 = por %p187, %p188
      %p191 = scmp.ne.s32.totalorder %s176, %s190
      %p192 = scmp.eq.s32.totalorder %s26, 0
      %p193 = por %p191, %p192
      %s195 = sadd.s32 %s194, 1
      %p198 = scmp.eq.s32.totalorder %s20, 1
      %p199 = scmp.ne.s32.totalorder %s194, %s196
      %p200 = scmp.eq.s32.totalorder %s20, 0
      %p201 = por %p199, %p200
      %p202 = scmp.ne.s32.totalorder %s194, %s196
      %p203 = scmp.eq.s32.totalorder %s25, 1
      %p204 = por %p202, %p203
      %p205 = scmp.ne.s32.totalorder %s196, %s197
      %p206 = scmp.eq.s32.totalorder %s25, 0
      %p207 = por %p205, %p206
      %p208 = scmp.ne.s32.totalorder %s196, %s197
      %p209 = scmp.eq.s32.totalorder %s26, 1
      %p210 = por %p208, %p209
      %p212 = scmp.ne.s32.totalorder %s197, %s211
      %p213 = scmp.eq.s32.totalorder %s26, 0
      %p214 = por %p212, %p213
      %s216 = sadd.s32 %s215, 1
      %p219 = scmp.eq.s32.totalorder %s20, 1
      %p220 = scmp.ne.s32.totalorder %s215, %s217
      %p221 = scmp.eq.s32.totalorder %s20, 0
      %p222 = por %p220, %p221
      %p223 = scmp.ne.s32.totalorder %s215, %s217
      %p224 = scmp.eq.s32.totalorder %s25, 1
      %p225 = por %p223, %p224
      %p226 = scmp.ne.s32.totalorder %s217, %s218
      %p227 = scmp.eq.s32.totalorder %s25, 0
      %p228 = por %p226, %p227
      %p229 = scmp.ne.s32.totalorder %s217, %s218
      %p230 = scmp.eq.s32.totalorder %s26, 1
      %p231 = por %p229, %p230
      %p233 = scmp.ne.s32.totalorder %s218, %s232
      %p234 = scmp.eq.s32.totalorder %s26, 0
      %p235 = por %p233, %p234
      %s236 = ssub.s32 %s27, %s39
      %s237 = ssub.s32 %s28, %s35
      %s238 = sor.u32 %s236, %s237
      %p239 = scmp.eq.s32.totalorder %s238, 0
      %s241 = sadd.s32 %s240, 1
      %s242 = scalar_select %p239, %s240, %s241
      %p245 = pneg %p239
      %p246 = scmp.eq.s32.totalorder %s20, 1
      %p247 = por %p245, %p246
      %p248 = scmp.ne.s32.totalorder %s240, %s243
      %p249 = scmp.eq.s32.totalorder %s20, 0
      %p250 = por %p248, %p249
      %p251 = scmp.ne.s32.totalorder %s240, %s243
      %p252 = scmp.eq.s32.totalorder %s25, 1
      %p253 = por %p251, %p252
      %p254 = scmp.ne.s32.totalorder %s243, %s244
      %p255 = scmp.eq.s32.totalorder %s25, 0
      %p256 = por %p254, %p255
      %p257 = scmp.ne.s32.totalorder %s243, %s244
      %p258 = scmp.eq.s32.totalorder %s26, 1
      %p259 = por %p257, %p258
      %p261 = scmp.ne.s32.totalorder %s244, %s260
      %p262 = scmp.eq.s32.totalorder %s26, 0
      %p263 = por %p261, %p262
      %p264 = scmp.le.s32.totalorder 1, %s20
      %p265 = scmp.lt.s32.totalorder %s20, 3
      %p266 = pnand %p264, %p265
      %p267 = pneg %p266
      // Predicated region
      $region9: #{tpu_custom_call.1} parent=5 // pred_check
        _
      $region10: #{tpu_custom_call.1} parent=5 // pred_check_branch
        %269 = sbr.rel (%p266) target = $region12
      $region11: #{tpu_custom_call.1} parent=5 // pred_region
        %s270 = ssub.s32 %s20, 1
        // Predicated region
        $region13: #{tpu_custom_call.1} parent=11 // pred_check
          %p271 = pneg %p81
        $region14: #{tpu_custom_call.1} parent=11 // pred_check_branch
          %273 = sbr.rel (%p271) target = $region16
        $region15: #{tpu_custom_call.1} parent=11 // pred_region
          _
        $region16: #{tpu_custom_call.1} parent=11 // pred_fallthru
          _
        // Predicated region
        $region17: #{tpu_custom_call.1} parent=11 // pred_check
          %p274 = pneg %p102
        $region18: #{tpu_custom_call.1} parent=11 // pred_check_branch
          %276 = sbr.rel (%p274) target = $region20
        $region19: #{tpu_custom_call.1} parent=11 // pred_region
          _
        $region20: #{tpu_custom_call.1} parent=11 // pred_fallthru
          _
        // Predicated region
        $region21: #{tpu_custom_call.1} parent=11 // pred_check
          %p277 = pneg %p123
        $region22: #{tpu_custom_call.1} parent=11 // pred_check_branch
          %279 = sbr.rel (%p277) target = $region24
        $region23: #{tpu_custom_call.1} parent=11 // pred_region
          _
        $region24: #{tpu_custom_call.1} parent=11 // pred_fallthru
          _
        // Predicated region
        $region25: #{tpu_custom_call.1} parent=11 // pred_check
          %p280 = pneg %p144
        $region26: #{tpu_custom_call.1} parent=11 // pred_check_branch
          %282 = sbr.rel (%p280) target = $region28
        $region27: #{tpu_custom_call.1} parent=11 // pred_region
          _
        $region28: #{tpu_custom_call.1} parent=11 // pred_fallthru
          _
        // Predicated region
        $region29: #{tpu_custom_call.1} parent=11 // pred_check
          %p283 = pneg %p165
        $region30: #{tpu_custom_call.1} parent=11 // pred_check_branch
          %285 = sbr.rel (%p283) target = $region32
        $region31: #{tpu_custom_call.1} parent=11 // pred_region
          _
        $region32: #{tpu_custom_call.1} parent=11 // pred_fallthru
          _
        // Predicated region
        $region33: #{tpu_custom_call.1} parent=11 // pred_check
          %p286 = pneg %p186
        $region34: #{tpu_custom_call.1} parent=11 // pred_check_branch
          %288 = sbr.rel (%p286) target = $region36
        $region35: #{tpu_custom_call.1} parent=11 // pred_region
          _
        $region36: #{tpu_custom_call.1} parent=11 // pred_fallthru
          _
        // Predicated region
        $region37: #{tpu_custom_call.1} parent=11 // pred_check
          %p289 = pneg %p207
        $region38: #{tpu_custom_call.1} parent=11 // pred_check_branch
          %291 = sbr.rel (%p289) target = $region40
        $region39: #{tpu_custom_call.1} parent=11 // pred_region
          _
        $region40: #{tpu_custom_call.1} parent=11 // pred_fallthru
          _
        // Predicated region
        $region41: #{tpu_custom_call.1} parent=11 // pred_check
          %p292 = pneg %p228
        $region42: #{tpu_custom_call.1} parent=11 // pred_check_branch
          %294 = sbr.rel (%p292) target = $region44
        $region43: #{tpu_custom_call.1} parent=11 // pred_region
          _
        $region44: #{tpu_custom_call.1} parent=11 // pred_fallthru
          _
      $region12: #{tpu_custom_call.1} parent=5 // pred_fallthru
        _
      %p295 = scmp.lt.s32.totalorder %s20, 2
      // Predicated region
      $region45: #{tpu_custom_call.1} parent=5 // pred_check
        %p296 = pneg %p295
      $region46: #{tpu_custom_call.1} parent=5 // pred_check_branch
        %298 = sbr.rel (%p296) target = $region48
      $region47: #{tpu_custom_call.1} parent=5 // pred_region
        // Predicated region
        $region49: #{tpu_custom_call.1} parent=47 // pred_check
          %p299 = pneg %p54
        $region50: #{tpu_custom_call.1} parent=47 // pred_check_branch
          %301 = sbr.rel (%p299) target = $region52
        $region51: #{tpu_custom_call.1} parent=47 // pred_region
          %p302 = scmp.lt.s32.totalorder %s27, 1
          %s303 = scalar_select %p302, %s27, 1
          %p304 = scmp.lt.s32.totalorder %s28, 0
          %s305 = scalar_select %p304, %s28, 0
          %s306 = sadd.s32 %s305, %s303
          %s307 = smul.addr %s306, 4
          %s308 = scalar_lea.vmem %s0, %s307
        $region52: #{tpu_custom_call.1} parent=47 // pred_fallthru
          _
      $region48: #{tpu_custom_call.1} parent=5 // pred_fallthru
        _
      %p309 = scmp.le.s32.totalorder 1, %s20
      %p310 = scmp.lt.s32.totalorder %s20, 3
      %p311 = pnand %p309, %p310
      %p312 = pneg %p311
      // Predicated region
      $region53: #{tpu_custom_call.1} parent=5 // pred_check
        _
      $region54: #{tpu_custom_call.1} parent=5 // pred_check_branch
        %314 = sbr.rel (%p311) target = $region56
      $region55: #{tpu_custom_call.1} parent=5 // pred_region
        %s315 = ssub.s32 %s20, 1
        %p316 = scmp.lt.s32.totalorder %s29, 1
        %s317 = scalar_select %p316, %s29, 1
        %p318 = scmp.lt.s32.totalorder %s30, 0
        %s319 = scalar_select %p318, %s30, 0
        %s320 = sadd.s32 %s319, %s317
        %s321 = smul.addr %s320, 4
        %s322 = scalar_lea.vmem %s0, %s321
        %p323 = pneg %p60
        %p324 = pneg %p57
        %p325 = pneg %p81
        %p326 = pneg %p78
        %p327 = pneg %p102
        %p328 = pneg %p99
        %p329 = pneg %p123
        %p330 = pneg %p120
        %p331 = pneg %p144
        %p332 = pneg %p141
        %p333 = pneg %p165
        %p334 = pneg %p162
        %p335 = pneg %p186
        %p336 = pneg %p183
        %p337 = pneg %p207
        %p338 = pneg %p204
        %p339 = pneg %p228
        %p340 = pneg %p225
        %p341 = pneg %p256
        %p342 = pneg %p253
        %s343 = sand.u32 %s243, 1
        %s344 = scalar_lea.sflag [#allocation4], %s343
        %s345 = sand.u32 %s243, 1
        %s346 = scalar_lea.vmem [#allocation3], %s345
        %p347 = scmp.lt.s32.totalorder %s29, 1
        %s348 = scalar_select %p347, %s29, 1
        %p349 = scmp.lt.s32.totalorder %s30, 0
        %s350 = scalar_select %p349, %s30, 0
        %s351 = sadd.s32 %s350, %s348
        %s352 = smul.addr %s351, 4
        %s353 = scalar_lea.vmem %s0, %s352
        %v354 = vld [vmem:[%s1] sm:$0xff]
        %v355 = vld [vmem:[%s1 + $0x8] sm:$0xff]
        %v356 = vld [vmem:[%s1 + $0x10] sm:$0xff]
        %v357 = vld [vmem:[%s1 + $0x18] sm:$0xff]
        %v358 = vld [vmem:[%s2] sm:$0xff]
        %v359 = vld [vmem:[%s2 + $0x8] sm:$0xff]
        %v360 = vld [vmem:[%s2 + $0x10] sm:$0xff]
        %v361 = vld [vmem:[%s2 + $0x18] sm:$0xff]
        %v362 = vld [vmem:[%s3] sm:$0xff]
        %v363 = vld [vmem:[%s3 + $0x8] sm:$0xff]
        %v364 = vld [vmem:[%s3 + $0x10] sm:$0xff]
        %v365 = vld [vmem:[%s3 + $0x18] sm:$0xff]
        %v366 = vld [vmem:[%s4] sm:$0xff]
        %v367 = vld [vmem:[%s4 + $0x8] sm:$0xff]
        %v368 = vld [vmem:[%s4 + $0x10] sm:$0xff]
        %v369 = vld [vmem:[%s4 + $0x18] sm:$0xff]
        %v370 = vld [vmem:[%s5] sm:$0xff]
        %v371 = vld [vmem:[%s5 + $0x8] sm:$0xff]
        %v372 = vld [vmem:[%s5 + $0x10] sm:$0xff]
        %v373 = vld [vmem:[%s5 + $0x18] sm:$0xff]
        %v374 = vld [vmem:[%s6] sm:$0x1]
        %v375 = vld [vmem:[%s7] sm:$0x1]
        %v376 = vld [vmem:[#allocation2] sm:$0x1]
        %v377 = vld [vmem:[%s353] sm:$0xf]
        %379 = vset.pattern.permute.xlu0 0
        %380 = vperm.xlu0 %379, %v358
        %v381 = vpop.permute.xlu0 %380
        %384 = vset.pattern.permute.xlu0 0
        %385 = vperm.xlu0 %384, %v359
        %v386 = vpop.permute.xlu0 %385
        %389 = vset.pattern.permute.xlu0 0
        %390 = vperm.xlu0 %389, %v360
        %v391 = vpop.permute.xlu0 %390
        %394 = vset.pattern.permute.xlu0 0
        %395 = vperm.xlu0 %394, %v361
        %v396 = vpop.permute.xlu0 %395
        %vm398 = vcmask 31744
        %v400 = vsel %vm398, %v354, 0
        %v403 = vsel %vm398, %v355, 0
        %v406 = vsel %vm398, %v356, 0
        %v409 = vsel %vm398, %v357, 0
        %vm411 = vcmask 1043456
        %v413 = vsel %vm411, %v377, 0
        %415 = vmatprep.subr.mxu0 0.0
        %416 = vmatpush1.msra.mxu0 0.0
        %417 = vmatprep.subr.mxu0 0.0
        %418 = vmatpush1.msra.mxu0 0.0
        %419 = vmatprep.subr.mxu0 0.0
        %420 = vmatpush1.msra.mxu0 0.0
        %421 = vmatprep.subr.mxu0 0.0
        %422 = vmatpush1.msra.mxu0 0.0
        %423 = vmatprep.subr.mxu0 0.0
        %424 = vmatpush1.msra.mxu0 0.0
        %425 = vmatprep.subr.mxu0 0.0
        %426 = vmatpush1.msra.mxu0 0.0
        %427 = vmatprep.subr.mxu0 0.0
        %428 = vmatpush1.msra.mxu0 0.0
        %429 = vmatprep.subr.mxu0 0.0
        %430 = vmatpush1.msra.mxu0 0.0
        %431 = vmatprep.subr.mxu0 0.0
        %432 = vmatpush1.msra.mxu0 0.0
        %433 = vmatprep.subr.mxu0 0.0
        %434 = vmatpush1.msra.mxu0 0.0
        %435 = vmatprep.subr.mxu0 0.0
        %436 = vmatpush1.msra.mxu0 0.0
        %437 = vmatprep.subr.mxu0 0.0
        %438 = vmatpush1.msra.mxu0 0.0
        %439 = vmatprep.subr.mxu0 0.0
        %440 = vmatpush1.msra.mxu0 0.0
        %441 = vmatprep.subr.mxu0 0.0
        %442 = vmatpush1.msra.mxu0 0.0
        %443 = vmatprep.subr.mxu0 0.0
        %444 = vmatpush1.msra.mxu0 0.0
        %445 = vmatprep.subr.mxu0 0.0
        %446 = vmatpush1.msra.mxu0 %v413
        %447 = vmatprep.subr.mxu0 0.0
        %448 = vmatpush2.msra.mxu0 0.0
        %449 = vmatprep.subr.mxu0 0.0
        %450 = vmatpush2.msra.mxu0 0.0
        %451 = vmatprep.subr.mxu0 0.0
        %452 = vmatpush2.msra.mxu0 0.0
        %453 = vmatprep.subr.mxu0 0.0
        %454 = vmatpush2.msra.mxu0 0.0
        %455 = vmatprep.subr.mxu0 0.0
        %456 = vmatpush2.msra.mxu0 0.0
        %457 = vmatprep.subr.mxu0 0.0
        %458 = vmatpush2.msra.mxu0 0.0
        %459 = vmatprep.subr.mxu0 0.0
        %460 = vmatpush2.msra.mxu0 0.0
        %461 = vmatprep.subr.mxu0 0.0
        %462 = vmatpush2.msra.mxu0 0.0
        %463 = vmatprep.subr.mxu0 0.0
        %464 = vmatpush2.msra.mxu0 0.0
        %465 = vmatprep.subr.mxu0 0.0
        %466 = vmatpush2.msra.mxu0 0.0
        %467 = vmatprep.subr.mxu0 0.0
        %468 = vmatpush2.msra.mxu0 0.0
        %469 = vmatprep.subr.mxu0 0.0
        %470 = vmatpush2.msra.mxu0 0.0
        %471 = vmatprep.subr.mxu0 0.0
        %472 = vmatpush2.msra.mxu0 0.0
        %473 = vmatprep.subr.mxu0 0.0
        %474 = vmatpush2.msra.mxu0 0.0
        %475 = vmatprep.subr.mxu0 0.0
        %476 = vmatpush2.msra.mxu0 0.0
        %477 = vmatprep.subr.mxu0 0.0
        %478 = vmatpush2.msra.mxu0 0.0
        %479 = vmatprep.mubr.f32.mxu0 0.0
        %480 = vmatmul.mubr.f32.gmra.mxu0 %v400
        %v481 = vpop.f32.mrf.mxu0
        %v482 = vadd.f32 %v381, %v481
        %v483 = vpop.f32.mrf.mxu0
        %484 = vmatprep.mubr.f32.mxu0 0.0
        %485 = vmatmul.mubr.f32.gmra.mxu0 %v403
        %v486 = vpop.f32.mrf.mxu0
        %v487 = vadd.f32 %v386, %v486
        %v488 = vpop.f32.mrf.mxu0
        %489 = vmatprep.mubr.f32.mxu0 0.0
        %490 = vmatmul.mubr.f32.gmra.mxu0 %v406
        %v491 = vpop.f32.mrf.mxu0
        %v492 = vadd.f32 %v391, %v491
        %v493 = vpop.f32.mrf.mxu0
        %494 = vmatprep.mubr.f32.mxu0 0.0
        %495 = vmatmul.mubr.f32.gmra.mxu0 %v409
        %v496 = vpop.f32.mrf.mxu0
        %v497 = vadd.f32 %v396, %v496
        %v498 = vpop.f32.mrf.mxu0
        %499 = vdwg.mxu0
        %v500 = vand.u32 2147483647, %v482
        %vm501 = vcmp.le.f32.partialorder %v500, 0.7853982
        %vm502 = vcmp.lt.s32.totalorder %v482, 0
        %v503 = vand.u32 %v482, 2139095040
        %v504 = vshrl.u32 %v503, 23
        %v505 = vsub.s32 %v504, 127
        %v506 = vand.u32 2147483647, %v482
        %v507 = vand.u32 %v506, 8388607
        %v508 = vor.u32 %v507, 8388608
        %v509 = vsub.s32 0, %v508
        %v510 = vadd.s32 %v505, 1
        %vm511 = vcmp.gt.s32.totalorder %v510, 0
        %v512 = vsel %vm511, %v510, 0
        %v513 = vshrl.u32 %v512, 5
        %v514 = vand.u32 %v512, 31
        %v515 = vsub.s32 32, %v514
        %v516 = vshrl.u32 683565275, %v515
        %v517 = vshll.u32 683565275, %v514
        %v518 = vshrl.u32 2475754826, %v515
        %v519 = vor.u32 %v517, %v518
        %v520 = vshll.u32 2475754826, %v514
        %v521 = vshrl.u32 2131351028, %v515
        %v522 = vor.u32 %v520, %v521
        %v523 = vshll.u32 2131351028, %v514
        %v524 = vshrl.u32 2102212464, %v515
        %v525 = vor.u32 %v523, %v524
        %v526 = vshll.u32 2102212464, %v514
        %v527 = vshrl.u32 920167782, %v515
        %v528 = vor.u32 %v526, %v527
        %v529 = vshll.u32 920167782, %v514
        %v530 = vshrl.u32 1326507024, %v515
        %v531 = vor.u32 %v529, %v530
        %vm532 = vcmp.lt.s32.totalorder %v513, 1
        %vm533 = vcmp.lt.s32.totalorder %v513, 2
        %vm534 = vcmp.lt.s32.totalorder %v513, 3
        %vm535 = vcmp.lt.s32.totalorder %v513, 4
        %v536 = vsel %vm532, %v516, %v519
        %v537 = vsel %vm535, %v525, 2102212464
        %v538 = vsel %vm534, %v522, %v537
        %v539 = vsel %vm533, %v536, %v538
        %v540 = vsel %vm532, %v519, %v522
        %v541 = vsel %vm535, %v528, 920167782
        %v542 = vsel %vm534, %v525, %v541
        %v543 = vsel %vm533, %v540, %v542
        %v544 = vsel %vm532, %v522, %v525
        %v545 = vsel %vm535, %v531, 1326507024
        %v546 = vsel %vm534, %v528, %v545
        %v547 = vsel %vm533, %v544, %v546
        %v548 = vshll.u32 %v508, 8
        %v549 = vmul.u32.u64.compose %v548, %v547
        %v550 = vextract.low.u32 %v549
        %v551 = vextract.high.u32 %v549
        %v552 = vmul.u32.u64.compose %v548, %v543
        %v553 = vextract.low.u32 %v552
        %v554 = vextract.high.u32 %v552
        %v555 = vmul.u32 %v548, %v539
        %v556 = vadd.s32 %v551, %v553
        %vm557 = vc.u32 %v551, %v553
        %v558 = vadd.s32 %v554, 1
        %v559 = vsel %vm557, %v558, %v554
        %v560 = vadd.s32 %v555, %v559
        %v561 = vadd.s32 %v560, 536870912
        %v562 = vshrl.u32 %v561, 30
        %v563 = vshll.u32 %v562, 30
        %v564 = vsub.s32 %v560, %v563
        %vm565 = vcmp.lt.s32.totalorder %v564, 0
        %v566 = vsub.s32 0, %v564
        %v567 = vsel %vm565, %v566, %v564
        %v568 = vclz %v567
        %v569 = vsub.s32 %v568, 2
        %vm570 = vcmp.gt.s32.totalorder 0, %v569
        %v571 = vsel %vm570, 0, %v569
        %v572 = vsub.s32 32, %v571
        %v573 = vshll.u32 %v564, %v571
        %v574 = vshrl.u32 %v556, %v572
        %v575 = vor.u32 %v573, %v574
        %v576 = vsub.s32 4294967266, %v571
        %v577 = vadd.s32 %v576, 127
        %v578 = vshll.u32 %v577, 23
        %v579 = vor.u32 4788187, %v578
        %v580 = vand.u32 2147483647, %v579
        %v582 = vcvt.s32.f32 %v575
        %v583 = vmul.f32 %v582, %v580
        %v584 = vxor.u32 %v583, 2147483648
        %v585 = vsel %vm502, %v584, %v583
        %v586 = vsub.s32 4, %v562
        %v587 = vsel %vm502, %v586, %v562
        %v588 = vsel %vm501, %v482, %v585
        %v589 = vsel %vm501, 0, %v587
        %v590 = vcosq.f32.pop %v588
        %v591 = vsinq.f32.pop %v588
        %vm592 = vweird.f32 %v482
        %v593 = vadd.s32 %v589, 3
        %v594 = vand.u32 %v593, 3
        %vm595 = vcmp.lt.s32.totalorder %v594, 2
        %vm596 = vcmp.eq.s32.totalorder %v594, 0
        %v597 = vxor.u32 %v591, 2147483648
        %v598 = vsel %vm596, %v590, %v597
        %vm599 = vcmp.eq.s32.totalorder %v594, 2
        %v600 = vxor.u32 %v590, 2147483648
        %v601 = vsel %vm599, %v600, %v591
        %v602 = vsel %vm595, %v598, %v601
        %v603 = vsel %vm592, nan, %v602
        %v604 = vand.u32 2147483647, %v487
        %vm605 = vcmp.le.f32.partialorder %v604, 0.7853982
        %vm606 = vcmp.lt.s32.totalorder %v487, 0
        %v607 = vand.u32 %v487, 2139095040
        %v608 = vshrl.u32 %v607, 23
        %v609 = vsub.s32 %v608, 127
        %v610 = vand.u32 2147483647, %v487
        %v611 = vand.u32 %v610, 8388607
        %v612 = vor.u32 %v611, 8388608
        %v613 = vsub.s32 0, %v612
        %v614 = vadd.s32 %v609, 1
        %vm615 = vcmp.gt.s32.totalorder %v614, 0
        %v616 = vsel %vm615, %v614, 0
        %v617 = vshrl.u32 %v616, 5
        %v618 = vand.u32 %v616, 31
        %v619 = vsub.s32 32, %v618
        %v620 = vshrl.u32 683565275, %v619
        %v621 = vshll.u32 683565275, %v618
        %v622 = vshrl.u32 2475754826, %v619
        %v623 = vor.u32 %v621, %v622
        %v624 = vshll.u32 2475754826, %v618
        %v625 = vshrl.u32 2131351028, %v619
        %v626 = vor.u32 %v624, %v625
        %v627 = vshll.u32 2131351028, %v618
        %v628 = vshrl.u32 2102212464, %v619
        %v629 = vor.u32 %v627, %v628
        %v630 = vshll.u32 2102212464, %v618
        %v631 = vshrl.u32 920167782, %v619
        %v632 = vor.u32 %v630, %v631
        %v633 = vshll.u32 920167782, %v618
        %v634 = vshrl.u32 1326507024, %v619
        %v635 = vor.u32 %v633, %v634
        %vm636 = vcmp.lt.s32.totalorder %v617, 1
        %vm637 = vcmp.lt.s32.totalorder %v617, 2
        %vm638 = vcmp.lt.s32.totalorder %v617, 3
        %vm639 = vcmp.lt.s32.totalorder %v617, 4
        %v640 = vsel %vm636, %v620, %v623
        %v641 = vsel %vm639, %v629, 2102212464
        %v642 = vsel %vm638, %v626, %v641
        %v643 = vsel %vm637, %v640, %v642
        %v644 = vsel %vm636, %v623, %v626
        %v645 = vsel %vm639, %v632, 920167782
        %v646 = vsel %vm638, %v629, %v645
        %v647 = vsel %vm637, %v644, %v646
        %v648 = vsel %vm636, %v626, %v629
        %v649 = vsel %vm639, %v635, 1326507024
        %v650 = vsel %vm638, %v632, %v649
        %v651 = vsel %vm637, %v648, %v650
        %v652 = vshll.u32 %v612, 8
        %v653 = vmul.u32.u64.compose %v652, %v651
        %v654 = vextract.low.u32 %v653
        %v655 = vextract.high.u32 %v653
        %v656 = vmul.u32.u64.compose %v652, %v647
        %v657 = vextract.low.u32 %v656
        %v658 = vextract.high.u32 %v656
        %v659 = vmul.u32 %v652, %v643
        %v660 = vadd.s32 %v655, %v657
        %vm661 = vc.u32 %v655, %v657
        %v662 = vadd.s32 %v658, 1
        %v663 = vsel %vm661, %v662, %v658
        %v664 = vadd.s32 %v659, %v663
        %v665 = vadd.s32 %v664, 536870912
        %v666 = vshrl.u32 %v665, 30
        %v667 = vshll.u32 %v666, 30
        %v668 = vsub.s32 %v664, %v667
        %vm669 = vcmp.lt.s32.totalorder %v668, 0
        %v670 = vsub.s32 0, %v668
        %v671 = vsel %vm669, %v670, %v668
        %v672 = vclz %v671
        %v673 = vsub.s32 %v672, 2
        %vm674 = vcmp.gt.s32.totalorder 0, %v673
        %v675 = vsel %vm674, 0, %v673
        %v676 = vsub.s32 32, %v675
        %v677 = vshll.u32 %v668, %v675
        %v678 = vshrl.u32 %v660, %v676
        %v679 = vor.u32 %v677, %v678
        %v680 = vsub.s32 4294967266, %v675
        %v681 = vadd.s32 %v680, 127
        %v682 = vshll.u32 %v681, 23
        %v683 = vor.u32 4788187, %v682
        %v684 = vand.u32 2147483647, %v683
        %v686 = vcvt.s32.f32 %v679
        %v687 = vmul.f32 %v686, %v684
        %v688 = vxor.u32 %v687, 2147483648
        %v689 = vsel %vm606, %v688, %v687
        %v690 = vsub.s32 4, %v666
        %v691 = vsel %vm606, %v690, %v666
        %v692 = vsel %vm605, %v487, %v689
        %v693 = vsel %vm605, 0, %v691
        %v694 = vcosq.f32.pop %v692
        %v695 = vsinq.f32.pop %v692
        %vm696 = vweird.f32 %v487
        %v697 = vadd.s32 %v693, 3
        %v698 = vand.u32 %v697, 3
        %vm699 = vcmp.lt.s32.totalorder %v698, 2
        %vm700 = vcmp.eq.s32.totalorder %v698, 0
        %v701 = vxor.u32 %v695, 2147483648
        %v702 = vsel %vm700, %v694, %v701
        %vm703 = vcmp.eq.s32.totalorder %v698, 2
        %v704 = vxor.u32 %v694, 2147483648
        %v705 = vsel %vm703, %v704, %v695
        %v706 = vsel %vm699, %v702, %v705
        %v707 = vsel %vm696, nan, %v706
        %v708 = vand.u32 2147483647, %v492
        %vm709 = vcmp.le.f32.partialorder %v708, 0.7853982
        %vm710 = vcmp.lt.s32.totalorder %v492, 0
        %v711 = vand.u32 %v492, 2139095040
        %v712 = vshrl.u32 %v711, 23
        %v713 = vsub.s32 %v712, 127
        %v714 = vand.u32 2147483647, %v492
        %v715 = vand.u32 %v714, 8388607
        %v716 = vor.u32 %v715, 8388608
        %v717 = vsub.s32 0, %v716
        %v718 = vadd.s32 %v713, 1
        %vm719 = vcmp.gt.s32.totalorder %v718, 0
        %v720 = vsel %vm719, %v718, 0
        %v721 = vshrl.u32 %v720, 5
        %v722 = vand.u32 %v720, 31
        %v723 = vsub.s32 32, %v722
        %v724 = vshrl.u32 683565275, %v723
        %v725 = vshll.u32 683565275, %v722
        %v726 = vshrl.u32 2475754826, %v723
        %v727 = vor.u32 %v725, %v726
        %v728 = vshll.u32 2475754826, %v722
        %v729 = vshrl.u32 2131351028, %v723
        %v730 = vor.u32 %v728, %v729
        %v731 = vshll.u32 2131351028, %v722
        %v732 = vshrl.u32 2102212464, %v723
        %v733 = vor.u32 %v731, %v732
        %v734 = vshll.u32 2102212464, %v722
        %v735 = vshrl.u32 920167782, %v723
        %v736 = vor.u32 %v734, %v735
        %v737 = vshll.u32 920167782, %v722
        %v738 = vshrl.u32 1326507024, %v723
        %v739 = vor.u32 %v737, %v738
        %vm740 = vcmp.lt.s32.totalorder %v721, 1
        %vm741 = vcmp.lt.s32.totalorder %v721, 2
        %vm742 = vcmp.lt.s32.totalorder %v721, 3
        %vm743 = vcmp.lt.s32.totalorder %v721, 4
        %v744 = vsel %vm740, %v724, %v727
        %v745 = vsel %vm743, %v733, 2102212464
        %v746 = vsel %vm742, %v730, %v745
        %v747 = vsel %vm741, %v744, %v746
        %v748 = vsel %vm740, %v727, %v730
        %v749 = vsel %vm743, %v736, 920167782
        %v750 = vsel %vm742, %v733, %v749
        %v751 = vsel %vm741, %v748, %v750
        %v752 = vsel %vm740, %v730, %v733
        %v753 = vsel %vm743, %v739, 1326507024
        %v754 = vsel %vm742, %v736, %v753
        %v755 = vsel %vm741, %v752, %v754
        %v756 = vshll.u32 %v716, 8
        %v757 = vmul.u32.u64.compose %v756, %v755
        %v758 = vextract.low.u32 %v757
        %v759 = vextract.high.u32 %v757
        %v760 = vmul.u32.u64.compose %v756, %v751
        %v761 = vextract.low.u32 %v760
        %v762 = vextract.high.u32 %v760
        %v763 = vmul.u32 %v756, %v747
        %v764 = vadd.s32 %v759, %v761
        %vm765 = vc.u32 %v759, %v761
        %v766 = vadd.s32 %v762, 1
        %v767 = vsel %vm765, %v766, %v762
        %v768 = vadd.s32 %v763, %v767
        %v769 = vadd.s32 %v768, 536870912
        %v770 = vshrl.u32 %v769, 30
        %v771 = vshll.u32 %v770, 30
        %v772 = vsub.s32 %v768, %v771
        %vm773 = vcmp.lt.s32.totalorder %v772, 0
        %v774 = vsub.s32 0, %v772
        %v775 = vsel %vm773, %v774, %v772
        %v776 = vclz %v775
        %v777 = vsub.s32 %v776, 2
        %vm778 = vcmp.gt.s32.totalorder 0, %v777
        %v779 = vsel %vm778, 0, %v777
        %v780 = vsub.s32 32, %v779
        %v781 = vshll.u32 %v772, %v779
        %v782 = vshrl.u32 %v764, %v780
        %v783 = vor.u32 %v781, %v782
        %v784 = vsub.s32 4294967266, %v779
        %v785 = vadd.s32 %v784, 127
        %v786 = vshll.u32 %v785, 23
        %v787 = vor.u32 4788187, %v786
        %v788 = vand.u32 2147483647, %v787
        %v790 = vcvt.s32.f32 %v783
        %v791 = vmul.f32 %v790, %v788
        %v792 = vxor.u32 %v791, 2147483648
        %v793 = vsel %vm710, %v792, %v791
        %v794 = vsub.s32 4, %v770
        %v795 = vsel %vm710, %v794, %v770
        %v796 = vsel %vm709, %v492, %v793
        %v797 = vsel %vm709, 0, %v795
        %v798 = vcosq.f32.pop %v796
        %v799 = vsinq.f32.pop %v796
        %vm800 = vweird.f32 %v492
        %v801 = vadd.s32 %v797, 3
        %v802 = vand.u32 %v801, 3
        %vm803 = vcmp.lt.s32.totalorder %v802, 2
        %vm804 = vcmp.eq.s32.totalorder %v802, 0
        %v805 = vxor.u32 %v799, 2147483648
        %v806 = vsel %vm804, %v798, %v805
        %vm807 = vcmp.eq.s32.totalorder %v802, 2
        %v808 = vxor.u32 %v798, 2147483648
        %v809 = vsel %vm807, %v808, %v799
        %v810 = vsel %vm803, %v806, %v809
        %v811 = vsel %vm800, nan, %v810
        %v812 = vand.u32 2147483647, %v497
        %vm813 = vcmp.le.f32.partialorder %v812, 0.7853982
        %vm814 = vcmp.lt.s32.totalorder %v497, 0
        %v815 = vand.u32 %v497, 2139095040
        %v816 = vshrl.u32 %v815, 23
        %v817 = vsub.s32 %v816, 127
        %v818 = vand.u32 2147483647, %v497
        %v819 = vand.u32 %v818, 8388607
        %v820 = vor.u32 %v819, 8388608
        %v821 = vsub.s32 0, %v820
        %v822 = vadd.s32 %v817, 1
        %vm823 = vcmp.gt.s32.totalorder %v822, 0
        %v824 = vsel %vm823, %v822, 0
        %v825 = vshrl.u32 %v824, 5
        %v826 = vand.u32 %v824, 31
        %v827 = vsub.s32 32, %v826
        %v828 = vshrl.u32 683565275, %v827
        %v829 = vshll.u32 683565275, %v826
        %v830 = vshrl.u32 2475754826, %v827
        %v831 = vor.u32 %v829, %v830
        %v832 = vshll.u32 2475754826, %v826
        %v833 = vshrl.u32 2131351028, %v827
        %v834 = vor.u32 %v832, %v833
        %v835 = vshll.u32 2131351028, %v826
        %v836 = vshrl.u32 2102212464, %v827
        %v837 = vor.u32 %v835, %v836
        %v838 = vshll.u32 2102212464, %v826
        %v839 = vshrl.u32 920167782, %v827
        %v840 = vor.u32 %v838, %v839
        %v841 = vshll.u32 920167782, %v826
        %v842 = vshrl.u32 1326507024, %v827
        %v843 = vor.u32 %v841, %v842
        %vm844 = vcmp.lt.s32.totalorder %v825, 1
        %vm845 = vcmp.lt.s32.totalorder %v825, 2
        %vm846 = vcmp.lt.s32.totalorder %v825, 3
        %vm847 = vcmp.lt.s32.totalorder %v825, 4
        %v848 = vsel %vm844, %v828, %v831
        %v849 = vsel %vm847, %v837, 2102212464
        %v850 = vsel %vm846, %v834, %v849
        %v851 = vsel %vm845, %v848, %v850
        %v852 = vsel %vm844, %v831, %v834
        %v853 = vsel %vm847, %v840, 920167782
        %v854 = vsel %vm846, %v837, %v853
        %v855 = vsel %vm845, %v852, %v854
        %v856 = vsel %vm844, %v834, %v837
        %v857 = vsel %vm847, %v843, 1326507024
        %v858 = vsel %vm846, %v840, %v857
        %v859 = vsel %vm845, %v856, %v858
        %v860 = vshll.u32 %v820, 8
        %v861 = vmul.u32.u64.compose %v860, %v859
        %v862 = vextract.low.u32 %v861
        %v863 = vextract.high.u32 %v861
        %v864 = vmul.u32.u64.compose %v860, %v855
        %v865 = vextract.low.u32 %v864
        %v866 = vextract.high.u32 %v864
        %v867 = vmul.u32 %v860, %v851
        %v868 = vadd.s32 %v863, %v865
        %vm869 = vc.u32 %v863, %v865
        %v870 = vadd.s32 %v866, 1
        %v871 = vsel %vm869, %v870, %v866
        %v872 = vadd.s32 %v867, %v871
        %v873 = vadd.s32 %v872, 536870912
        %v874 = vshrl.u32 %v873, 30
        %v875 = vshll.u32 %v874, 30
        %v876 = vsub.s32 %v872, %v875
        %vm877 = vcmp.lt.s32.totalorder %v876, 0
        %v878 = vsub.s32 0, %v876
        %v879 = vsel %vm877, %v878, %v876
        %v880 = vclz %v879
        %v881 = vsub.s32 %v880, 2
        %vm882 = vcmp.gt.s32.totalorder 0, %v881
        %v883 = vsel %vm882, 0, %v881
        %v884 = vsub.s32 32, %v883
        %v885 = vshll.u32 %v876, %v883
        %v886 = vshrl.u32 %v868, %v884
        %v887 = vor.u32 %v885, %v886
        %v888 = vsub.s32 4294967266, %v883
        %v889 = vadd.s32 %v888, 127
        %v890 = vshll.u32 %v889, 23
        %v891 = vor.u32 4788187, %v890
        %v892 = vand.u32 2147483647, %v891
        %v894 = vcvt.s32.f32 %v887
        %v895 = vmul.f32 %v894, %v892
        %v896 = vxor.u32 %v895, 2147483648
        %v897 = vsel %vm814, %v896, %v895
        %v898 = vsub.s32 4, %v874
        %v899 = vsel %vm814, %v898, %v874
        %v900 = vsel %vm813, %v497, %v897
        %v901 = vsel %vm813, 0, %v899
        %v902 = vcosq.f32.pop %v900
        %v903 = vsinq.f32.pop %v900
        %vm904 = vweird.f32 %v497
        %v905 = vadd.s32 %v901, 3
        %v906 = vand.u32 %v905, 3
        %vm907 = vcmp.lt.s32.totalorder %v906, 2
        %vm908 = vcmp.eq.s32.totalorder %v906, 0
        %v909 = vxor.u32 %v903, 2147483648
        %v910 = vsel %vm908, %v902, %v909
        %vm911 = vcmp.eq.s32.totalorder %v906, 2
        %v912 = vxor.u32 %v902, 2147483648
        %v913 = vsel %vm911, %v912, %v903
        %v914 = vsel %vm907, %v910, %v913
        %v915 = vsel %vm904, nan, %v914
        %v917 = vsel %vm398, %v366, 0
        %v920 = vsel %vm398, %v367, 0
        %v923 = vsel %vm398, %v368, 0
        %v926 = vsel %vm398, %v369, 0
        %928 = vmatprep.subr.mxu0 0.0
        %929 = vmatpush1.msra.mxu0 0.0
        %930 = vmatprep.subr.mxu0 0.0
        %931 = vmatpush1.msra.mxu0 0.0
        %932 = vmatprep.subr.mxu0 0.0
        %933 = vmatpush1.msra.mxu0 0.0
        %934 = vmatprep.subr.mxu0 0.0
        %935 = vmatpush1.msra.mxu0 0.0
        %936 = vmatprep.subr.mxu0 0.0
        %937 = vmatpush1.msra.mxu0 0.0
        %938 = vmatprep.subr.mxu0 0.0
        %939 = vmatpush1.msra.mxu0 0.0
        %940 = vmatprep.subr.mxu0 0.0
        %941 = vmatpush1.msra.mxu0 0.0
        %942 = vmatprep.subr.mxu0 0.0
        %943 = vmatpush1.msra.mxu0 0.0
        %944 = vmatprep.subr.mxu0 0.0
        %945 = vmatpush1.msra.mxu0 0.0
        %946 = vmatprep.subr.mxu0 0.0
        %947 = vmatpush1.msra.mxu0 0.0
        %948 = vmatprep.subr.mxu0 0.0
        %949 = vmatpush1.msra.mxu0 0.0
        %950 = vmatprep.subr.mxu0 0.0
        %951 = vmatpush1.msra.mxu0 0.0
        %952 = vmatprep.subr.mxu0 0.0
        %953 = vmatpush1.msra.mxu0 0.0
        %954 = vmatprep.subr.mxu0 0.0
        %955 = vmatpush1.msra.mxu0 0.0
        %956 = vmatprep.subr.mxu0 0.0
        %957 = vmatpush1.msra.mxu0 0.0
        %958 = vmatprep.subr.mxu0 0.0
        %959 = vmatpush1.msra.mxu0 %v413
        %960 = vmatprep.subr.mxu0 0.0
        %961 = vmatpush2.msra.mxu0 0.0
        %962 = vmatprep.subr.mxu0 0.0
        %963 = vmatpush2.msra.mxu0 0.0
        %964 = vmatprep.subr.mxu0 0.0
        %965 = vmatpush2.msra.mxu0 0.0
        %966 = vmatprep.subr.mxu0 0.0
        %967 = vmatpush2.msra.mxu0 0.0
        %968 = vmatprep.subr.mxu0 0.0
        %969 = vmatpush2.msra.mxu0 0.0
        %970 = vmatprep.subr.mxu0 0.0
        %971 = vmatpush2.msra.mxu0 0.0
        %972 = vmatprep.subr.mxu0 0.0
        %973 = vmatpush2.msra.mxu0 0.0
        %974 = vmatprep.subr.mxu0 0.0
        %975 = vmatpush2.msra.mxu0 0.0
        %976 = vmatprep.subr.mxu0 0.0
        %977 = vmatpush2.msra.mxu0 0.0
        %978 = vmatprep.subr.mxu0 0.0
        %979 = vmatpush2.msra.mxu0 0.0
        %980 = vmatprep.subr.mxu0 0.0
        %981 = vmatpush2.msra.mxu0 0.0
        %982 = vmatprep.subr.mxu0 0.0
        %983 = vmatpush2.msra.mxu0 0.0
        %984 = vmatprep.subr.mxu0 0.0
        %985 = vmatpush2.msra.mxu0 0.0
        %986 = vmatprep.subr.mxu0 0.0
        %987 = vmatpush2.msra.mxu0 0.0
        %988 = vmatprep.subr.mxu0 0.0
        %989 = vmatpush2.msra.mxu0 0.0
        %990 = vmatprep.subr.mxu0 0.0
        %991 = vmatpush2.msra.mxu0 0.0
        %992 = vmatprep.mubr.f32.mxu0 0.0
        %993 = vmatmul.mubr.f32.gmra.mxu0 %v917
        %v994 = vpop.f32.mrf.mxu0
        %v995 = vadd.f32 0.0, %v994
        %v996 = vpop.f32.mrf.mxu0
        %997 = vmatprep.mubr.f32.mxu0 0.0
        %998 = vmatmul.mubr.f32.gmra.mxu0 %v920
        %v999 = vpop.f32.mrf.mxu0
        %v1000 = vadd.f32 0.0, %v999
        %v1001 = vpop.f32.mrf.mxu0
        %1002 = vmatprep.mubr.f32.mxu0 0.0
        %1003 = vmatmul.mubr.f32.gmra.mxu0 %v923
        %v1004 = vpop.f32.mrf.mxu0
        %v1005 = vadd.f32 0.0, %v1004
        %v1006 = vpop.f32.mrf.mxu0
        %1007 = vmatprep.mubr.f32.mxu0 0.0
        %1008 = vmatmul.mubr.f32.gmra.mxu0 %v926
        %v1009 = vpop.f32.mrf.mxu0
        %v1010 = vadd.f32 0.0, %v1009
        %v1011 = vpop.f32.mrf.mxu0
        %1012 = vdwg.mxu0
        %vm1013 = vcmask 261120
        %v1015 = vsel %vm1013, %v362, 0
        %v1018 = vsel %vm1013, %v363, 0
        %v1021 = vsel %vm1013, %v364, 0
        %v1024 = vsel %vm1013, %v365, 0
        %1026 = vmatprep.subr.mxu0 0.0
        %1027 = vmatpush1.msra.mxu0 0.0
        %1028 = vmatprep.subr.mxu0 0.0
        %1029 = vmatpush1.msra.mxu0 0.0
        %1030 = vmatprep.subr.mxu0 0.0
        %1031 = vmatpush1.msra.mxu0 0.0
        %1032 = vmatprep.subr.mxu0 0.0
        %1033 = vmatpush1.msra.mxu0 0.0
        %1034 = vmatprep.subr.mxu0 0.0
        %1035 = vmatpush1.msra.mxu0 0.0
        %1036 = vmatprep.subr.mxu0 0.0
        %1037 = vmatpush1.msra.mxu0 0.0
        %1038 = vmatprep.subr.mxu0 0.0
        %1039 = vmatpush1.msra.mxu0 0.0
        %1040 = vmatprep.subr.mxu0 0.0
        %1041 = vmatpush1.msra.mxu0 0.0
        %1042 = vmatprep.subr.mxu0 0.0
        %1043 = vmatpush1.msra.mxu0 0.0
        %1044 = vmatprep.subr.mxu0 0.0
        %1045 = vmatpush1.msra.mxu0 0.0
        %1046 = vmatprep.subr.mxu0 0.0
        %1047 = vmatpush1.msra.mxu0 0.0
        %1048 = vmatprep.subr.mxu0 0.0
        %1049 = vmatpush1.msra.mxu0 0.0
        %1050 = vmatprep.subr.mxu0 0.0
        %1051 = vmatpush1.msra.mxu0 %v915
        %1052 = vmatprep.subr.mxu0 0.0
        %1053 = vmatpush1.msra.mxu0 %v811
        %1054 = vmatprep.subr.mxu0 0.0
        %1055 = vmatpush1.msra.mxu0 %v707
        %1056 = vmatprep.subr.mxu0 0.0
        %1057 = vmatpush1.msra.mxu0 %v603
        %1058 = vmatprep.subr.mxu0 0.0
        %1059 = vmatpush2.msra.mxu0 0.0
        %1060 = vmatprep.subr.mxu0 0.0
        %1061 = vmatpush2.msra.mxu0 0.0
        %1062 = vmatprep.subr.mxu0 0.0
        %1063 = vmatpush2.msra.mxu0 0.0
        %1064 = vmatprep.subr.mxu0 0.0
        %1065 = vmatpush2.msra.mxu0 0.0
        %1066 = vmatprep.subr.mxu0 0.0
        %1067 = vmatpush2.msra.mxu0 0.0
        %1068 = vmatprep.subr.mxu0 0.0
        %1069 = vmatpush2.msra.mxu0 0.0
        %1070 = vmatprep.subr.mxu0 0.0
        %1071 = vmatpush2.msra.mxu0 0.0
        %1072 = vmatprep.subr.mxu0 0.0
        %1073 = vmatpush2.msra.mxu0 0.0
        %1074 = vmatprep.subr.mxu0 0.0
        %1075 = vmatpush2.msra.mxu0 0.0
        %1076 = vmatprep.subr.mxu0 0.0
        %1077 = vmatpush2.msra.mxu0 0.0
        %1078 = vmatprep.subr.mxu0 0.0
        %1079 = vmatpush2.msra.mxu0 0.0
        %1080 = vmatprep.subr.mxu0 0.0
        %1081 = vmatpush2.msra.mxu0 0.0
        %1082 = vmatprep.subr.mxu0 0.0
        %1083 = vmatpush2.msra.mxu0 0.0
        %1084 = vmatprep.subr.mxu0 0.0
        %1085 = vmatpush2.msra.mxu0 0.0
        %1086 = vmatprep.subr.mxu0 0.0
        %1087 = vmatpush2.msra.mxu0 0.0
        %1088 = vmatprep.subr.mxu0 0.0
        %1089 = vmatpush2.msra.mxu0 0.0
        %1090 = vmatprep.mubr.f32.mxu0 0.0
        %1091 = vmatmul.mubr.f32.gmra.mxu0 %v1015
        %v1092 = vpop.f32.mrf.mxu0
        %v1093 = vadd.f32 %v995, %v1092
        %v1094 = vpop.f32.mrf.mxu0
        %1095 = vmatprep.mubr.f32.mxu0 0.0
        %1096 = vmatmul.mubr.f32.gmra.mxu0 %v1018
        %v1097 = vpop.f32.mrf.mxu0
        %v1098 = vadd.f32 %v1000, %v1097
        %v1099 = vpop.f32.mrf.mxu0
        %1100 = vmatprep.mubr.f32.mxu0 0.0
        %1101 = vmatmul.mubr.f32.gmra.mxu0 %v1021
        %v1102 = vpop.f32.mrf.mxu0
        %v1103 = vadd.f32 %v1005, %v1102
        %v1104 = vpop.f32.mrf.mxu0
        %1105 = vmatprep.mubr.f32.mxu0 0.0
        %1106 = vmatmul.mubr.f32.gmra.mxu0 %v1024
        %v1107 = vpop.f32.mrf.mxu0
        %v1108 = vadd.f32 %v1010, %v1107
        %v1109 = vpop.f32.mrf.mxu0
        %1110 = vdwg.mxu0
        %1112 = vset.pattern.permute.xlu0 0
        %1113 = vperm.xlu0 %1112, %v370
        %v1114 = vpop.permute.xlu0 %1113
        %1117 = vset.pattern.permute.xlu0 0
        %1118 = vperm.xlu0 %1117, %v371
        %v1119 = vpop.permute.xlu0 %1118
        %1122 = vset.pattern.permute.xlu0 0
        %1123 = vperm.xlu0 %1122, %v372
        %v1124 = vpop.permute.xlu0 %1123
        %1127 = vset.pattern.permute.xlu0 0
        %1128 = vperm.xlu0 %1127, %v373
        %v1129 = vpop.permute.xlu0 %1128
        %v1131 = vadd.f32 %v1093, %v1114
        %v1132 = vadd.f32 %v1098, %v1119
        %v1133 = vadd.f32 %v1103, %v1124
        %v1134 = vadd.f32 %v1108, %v1129
        %v1135 = vand.u32 2147483647, %v1131
        %vm1136 = vcmp.le.f32.partialorder %v1135, 0.7853982
        %vm1137 = vcmp.lt.s32.totalorder %v1131, 0
        %v1138 = vand.u32 %v1131, 2139095040
        %v1139 = vshrl.u32 %v1138, 23
        %v1140 = vsub.s32 %v1139, 127
        %v1141 = vand.u32 2147483647, %v1131
        %v1142 = vand.u32 %v1141, 8388607
        %v1143 = vor.u32 %v1142, 8388608
        %v1144 = vsub.s32 0, %v1143
        %v1145 = vadd.s32 %v1140, 1
        %vm1146 = vcmp.gt.s32.totalorder %v1145, 0
        %v1147 = vsel %vm1146, %v1145, 0
        %v1148 = vshrl.u32 %v1147, 5
        %v1149 = vand.u32 %v1147, 31
        %v1150 = vsub.s32 32, %v1149
        %v1151 = vshrl.u32 683565275, %v1150
        %v1152 = vshll.u32 683565275, %v1149
        %v1153 = vshrl.u32 2475754826, %v1150
        %v1154 = vor.u32 %v1152, %v1153
        %v1155 = vshll.u32 2475754826, %v1149
        %v1156 = vshrl.u32 2131351028, %v1150
        %v1157 = vor.u32 %v1155, %v1156
        %v1158 = vshll.u32 2131351028, %v1149
        %v1159 = vshrl.u32 2102212464, %v1150
        %v1160 = vor.u32 %v1158, %v1159
        %v1161 = vshll.u32 2102212464, %v1149
        %v1162 = vshrl.u32 920167782, %v1150
        %v1163 = vor.u32 %v1161, %v1162
        %v1164 = vshll.u32 920167782, %v1149
        %v1165 = vshrl.u32 1326507024, %v1150
        %v1166 = vor.u32 %v1164, %v1165
        %vm1167 = vcmp.lt.s32.totalorder %v1148, 1
        %vm1168 = vcmp.lt.s32.totalorder %v1148, 2
        %vm1169 = vcmp.lt.s32.totalorder %v1148, 3
        %vm1170 = vcmp.lt.s32.totalorder %v1148, 4
        %v1171 = vsel %vm1167, %v1151, %v1154
        %v1172 = vsel %vm1170, %v1160, 2102212464
        %v1173 = vsel %vm1169, %v1157, %v1172
        %v1174 = vsel %vm1168, %v1171, %v1173
        %v1175 = vsel %vm1167, %v1154, %v1157
        %v1176 = vsel %vm1170, %v1163, 920167782
        %v1177 = vsel %vm1169, %v1160, %v1176
        %v1178 = vsel %vm1168, %v1175, %v1177
        %v1179 = vsel %vm1167, %v1157, %v1160
        %v1180 = vsel %vm1170, %v1166, 1326507024
        %v1181 = vsel %vm1169, %v1163, %v1180
        %v1182 = vsel %vm1168, %v1179, %v1181
        %v1183 = vshll.u32 %v1143, 8
        %v1184 = vmul.u32.u64.compose %v1183, %v1182
        %v1185 = vextract.low.u32 %v1184
        %v1186 = vextract.high.u32 %v1184
        %v1187 = vmul.u32.u64.compose %v1183, %v1178
        %v1188 = vextract.low.u32 %v1187
        %v1189 = vextract.high.u32 %v1187
        %v1190 = vmul.u32 %v1183, %v1174
        %v1191 = vadd.s32 %v1186, %v1188
        %vm1192 = vc.u32 %v1186, %v1188
        %v1193 = vadd.s32 %v1189, 1
        %v1194 = vsel %vm1192, %v1193, %v1189
        %v1195 = vadd.s32 %v1190, %v1194
        %v1196 = vadd.s32 %v1195, 536870912
        %v1197 = vshrl.u32 %v1196, 30
        %v1198 = vshll.u32 %v1197, 30
        %v1199 = vsub.s32 %v1195, %v1198
        %vm1200 = vcmp.lt.s32.totalorder %v1199, 0
        %v1201 = vsub.s32 0, %v1199
        %v1202 = vsel %vm1200, %v1201, %v1199
        %v1203 = vclz %v1202
        %v1204 = vsub.s32 %v1203, 2
        %vm1205 = vcmp.gt.s32.totalorder 0, %v1204
        %v1206 = vsel %vm1205, 0, %v1204
        %v1207 = vsub.s32 32, %v1206
        %v1208 = vshll.u32 %v1199, %v1206
        %v1209 = vshrl.u32 %v1191, %v1207
        %v1210 = vor.u32 %v1208, %v1209
        %v1211 = vsub.s32 4294967266, %v1206
        %v1212 = vadd.s32 %v1211, 127
        %v1213 = vshll.u32 %v1212, 23
        %v1214 = vor.u32 4788187, %v1213
        %v1215 = vand.u32 2147483647, %v1214
        %v1217 = vcvt.s32.f32 %v1210
        %v1218 = vmul.f32 %v1217, %v1215
        %v1219 = vxor.u32 %v1218, 2147483648
        %v1220 = vsel %vm1137, %v1219, %v1218
        %v1221 = vsub.s32 4, %v1197
        %v1222 = vsel %vm1137, %v1221, %v1197
        %v1223 = vsel %vm1136, %v1131, %v1220
        %v1224 = vsel %vm1136, 0, %v1222
        %v1225 = vcosq.f32.pop %v1223
        %v1226 = vsinq.f32.pop %v1223
        %vm1227 = vweird.f32 %v1131
        %v1228 = vadd.s32 %v1224, 3
        %v1229 = vand.u32 %v1228, 3
        %vm1230 = vcmp.lt.s32.totalorder %v1229, 2
        %vm1231 = vcmp.eq.s32.totalorder %v1229, 0
        %v1232 = vxor.u32 %v1226, 2147483648
        %v1233 = vsel %vm1231, %v1225, %v1232
        %vm1234 = vcmp.eq.s32.totalorder %v1229, 2
        %v1235 = vxor.u32 %v1225, 2147483648
        %v1236 = vsel %vm1234, %v1235, %v1226
        %v1237 = vsel %vm1230, %v1233, %v1236
        %v1238 = vsel %vm1227, nan, %v1237
        %v1239 = vand.u32 2147483647, %v1132
        %vm1240 = vcmp.le.f32.partialorder %v1239, 0.7853982
        %vm1241 = vcmp.lt.s32.totalorder %v1132, 0
        %v1242 = vand.u32 %v1132, 2139095040
        %v1243 = vshrl.u32 %v1242, 23
        %v1244 = vsub.s32 %v1243, 127
        %v1245 = vand.u32 2147483647, %v1132
        %v1246 = vand.u32 %v1245, 8388607
        %v1247 = vor.u32 %v1246, 8388608
        %v1248 = vsub.s32 0, %v1247
        %v1249 = vadd.s32 %v1244, 1
        %vm1250 = vcmp.gt.s32.totalorder %v1249, 0
        %v1251 = vsel %vm1250, %v1249, 0
        %v1252 = vshrl.u32 %v1251, 5
        %v1253 = vand.u32 %v1251, 31
        %v1254 = vsub.s32 32, %v1253
        %v1255 = vshrl.u32 683565275, %v1254
        %v1256 = vshll.u32 683565275, %v1253
        %v1257 = vshrl.u32 2475754826, %v1254
        %v1258 = vor.u32 %v1256, %v1257
        %v1259 = vshll.u32 2475754826, %v1253
        %v1260 = vshrl.u32 2131351028, %v1254
        %v1261 = vor.u32 %v1259, %v1260
        %v1262 = vshll.u32 2131351028, %v1253
        %v1263 = vshrl.u32 2102212464, %v1254
        %v1264 = vor.u32 %v1262, %v1263
        %v1265 = vshll.u32 2102212464, %v1253
        %v1266 = vshrl.u32 920167782, %v1254
        %v1267 = vor.u32 %v1265, %v1266
        %v1268 = vshll.u32 920167782, %v1253
        %v1269 = vshrl.u32 1326507024, %v1254
        %v1270 = vor.u32 %v1268, %v1269
        %vm1271 = vcmp.lt.s32.totalorder %v1252, 1
        %vm1272 = vcmp.lt.s32.totalorder %v1252, 2
        %vm1273 = vcmp.lt.s32.totalorder %v1252, 3
        %vm1274 = vcmp.lt.s32.totalorder %v1252, 4
        %v1275 = vsel %vm1271, %v1255, %v1258
        %v1276 = vsel %vm1274, %v1264, 2102212464
        %v1277 = vsel %vm1273, %v1261, %v1276
        %v1278 = vsel %vm1272, %v1275, %v1277
        %v1279 = vsel %vm1271, %v1258, %v1261
        %v1280 = vsel %vm1274, %v1267, 920167782
        %v1281 = vsel %vm1273, %v1264, %v1280
        %v1282 = vsel %vm1272, %v1279, %v1281
        %v1283 = vsel %vm1271, %v1261, %v1264
        %v1284 = vsel %vm1274, %v1270, 1326507024
        %v1285 = vsel %vm1273, %v1267, %v1284
        %v1286 = vsel %vm1272, %v1283, %v1285
        %v1287 = vshll.u32 %v1247, 8
        %v1288 = vmul.u32.u64.compose %v1287, %v1286
        %v1289 = vextract.low.u32 %v1288
        %v1290 = vextract.high.u32 %v1288
        %v1291 = vmul.u32.u64.compose %v1287, %v1282
        %v1292 = vextract.low.u32 %v1291
        %v1293 = vextract.high.u32 %v1291
        %v1294 = vmul.u32 %v1287, %v1278
        %v1295 = vadd.s32 %v1290, %v1292
        %vm1296 = vc.u32 %v1290, %v1292
        %v1297 = vadd.s32 %v1293, 1
        %v1298 = vsel %vm1296, %v1297, %v1293
        %v1299 = vadd.s32 %v1294, %v1298
        %v1300 = vadd.s32 %v1299, 536870912
        %v1301 = vshrl.u32 %v1300, 30
        %v1302 = vshll.u32 %v1301, 30
        %v1303 = vsub.s32 %v1299, %v1302
        %vm1304 = vcmp.lt.s32.totalorder %v1303, 0
        %v1305 = vsub.s32 0, %v1303
        %v1306 = vsel %vm1304, %v1305, %v1303
        %v1307 = vclz %v1306
        %v1308 = vsub.s32 %v1307, 2
        %vm1309 = vcmp.gt.s32.totalorder 0, %v1308
        %v1310 = vsel %vm1309, 0, %v1308
        %v1311 = vsub.s32 32, %v1310
        %v1312 = vshll.u32 %v1303, %v1310
        %v1313 = vshrl.u32 %v1295, %v1311
        %v1314 = vor.u32 %v1312, %v1313
        %v1315 = vsub.s32 4294967266, %v1310
        %v1316 = vadd.s32 %v1315, 127
        %v1317 = vshll.u32 %v1316, 23
        %v1318 = vor.u32 4788187, %v1317
        %v1319 = vand.u32 2147483647, %v1318
        %v1321 = vcvt.s32.f32 %v1314
        %v1322 = vmul.f32 %v1321, %v1319
        %v1323 = vxor.u32 %v1322, 2147483648
        %v1324 = vsel %vm1241, %v1323, %v1322
        %v1325 = vsub.s32 4, %v1301
        %v1326 = vsel %vm1241, %v1325, %v1301
        %v1327 = vsel %vm1240, %v1132, %v1324
        %v1328 = vsel %vm1240, 0, %v1326
        %v1329 = vcosq.f32.pop %v1327
        %v1330 = vsinq.f32.pop %v1327
        %vm1331 = vweird.f32 %v1132
        %v1332 = vadd.s32 %v1328, 3
        %v1333 = vand.u32 %v1332, 3
        %vm1334 = vcmp.lt.s32.totalorder %v1333, 2
        %vm1335 = vcmp.eq.s32.totalorder %v1333, 0
        %v1336 = vxor.u32 %v1330, 2147483648
        %v1337 = vsel %vm1335, %v1329, %v1336
        %vm1338 = vcmp.eq.s32.totalorder %v1333, 2
        %v1339 = vxor.u32 %v1329, 2147483648
        %v1340 = vsel %vm1338, %v1339, %v1330
        %v1341 = vsel %vm1334, %v1337, %v1340
        %v1342 = vsel %vm1331, nan, %v1341
        %v1343 = vand.u32 2147483647, %v1133
        %vm1344 = vcmp.le.f32.partialorder %v1343, 0.7853982
        %vm1345 = vcmp.lt.s32.totalorder %v1133, 0
        %v1346 = vand.u32 %v1133, 2139095040
        %v1347 = vshrl.u32 %v1346, 23
        %v1348 = vsub.s32 %v1347, 127
        %v1349 = vand.u32 2147483647, %v1133
        %v1350 = vand.u32 %v1349, 8388607
        %v1351 = vor.u32 %v1350, 8388608
        %v1352 = vsub.s32 0, %v1351
        %v1353 = vadd.s32 %v1348, 1
        %vm1354 = vcmp.gt.s32.totalorder %v1353, 0
        %v1355 = vsel %vm1354, %v1353, 0
        %v1356 = vshrl.u32 %v1355, 5
        %v1357 = vand.u32 %v1355, 31
        %v1358 = vsub.s32 32, %v1357
        %v1359 = vshrl.u32 683565275, %v1358
        %v1360 = vshll.u32 683565275, %v1357
        %v1361 = vshrl.u32 2475754826, %v1358
        %v1362 = vor.u32 %v1360, %v1361
        %v1363 = vshll.u32 2475754826, %v1357
        %v1364 = vshrl.u32 2131351028, %v1358
        %v1365 = vor.u32 %v1363, %v1364
        %v1366 = vshll.u32 2131351028, %v1357
        %v1367 = vshrl.u32 2102212464, %v1358
        %v1368 = vor.u32 %v1366, %v1367
        %v1369 = vshll.u32 2102212464, %v1357
        %v1370 = vshrl.u32 920167782, %v1358
        %v1371 = vor.u32 %v1369, %v1370
        %v1372 = vshll.u32 920167782, %v1357
        %v1373 = vshrl.u32 1326507024, %v1358
        %v1374 = vor.u32 %v1372, %v1373
        %vm1375 = vcmp.lt.s32.totalorder %v1356, 1
        %vm1376 = vcmp.lt.s32.totalorder %v1356, 2
        %vm1377 = vcmp.lt.s32.totalorder %v1356, 3
        %vm1378 = vcmp.lt.s32.totalorder %v1356, 4
        %v1379 = vsel %vm1375, %v1359, %v1362
        %v1380 = vsel %vm1378, %v1368, 2102212464
        %v1381 = vsel %vm1377, %v1365, %v1380
        %v1382 = vsel %vm1376, %v1379, %v1381
        %v1383 = vsel %vm1375, %v1362, %v1365
        %v1384 = vsel %vm1378, %v1371, 920167782
        %v1385 = vsel %vm1377, %v1368, %v1384
        %v1386 = vsel %vm1376, %v1383, %v1385
        %v1387 = vsel %vm1375, %v1365, %v1368
        %v1388 = vsel %vm1378, %v1374, 1326507024
        %v1389 = vsel %vm1377, %v1371, %v1388
        %v1390 = vsel %vm1376, %v1387, %v1389
        %v1391 = vshll.u32 %v1351, 8
        %v1392 = vmul.u32.u64.compose %v1391, %v1390
        %v1393 = vextract.low.u32 %v1392
        %v1394 = vextract.high.u32 %v1392
        %v1395 = vmul.u32.u64.compose %v1391, %v1386
        %v1396 = vextract.low.u32 %v1395
        %v1397 = vextract.high.u32 %v1395
        %v1398 = vmul.u32 %v1391, %v1382
        %v1399 = vadd.s32 %v1394, %v1396
        %vm1400 = vc.u32 %v1394, %v1396
        %v1401 = vadd.s32 %v1397, 1
        %v1402 = vsel %vm1400, %v1401, %v1397
        %v1403 = vadd.s32 %v1398, %v1402
        %v1404 = vadd.s32 %v1403, 536870912
        %v1405 = vshrl.u32 %v1404, 30
        %v1406 = vshll.u32 %v1405, 30
        %v1407 = vsub.s32 %v1403, %v1406
        %vm1408 = vcmp.lt.s32.totalorder %v1407, 0
        %v1409 = vsub.s32 0, %v1407
        %v1410 = vsel %vm1408, %v1409, %v1407
        %v1411 = vclz %v1410
        %v1412 = vsub.s32 %v1411, 2
        %vm1413 = vcmp.gt.s32.totalorder 0, %v1412
        %v1414 = vsel %vm1413, 0, %v1412
        %v1415 = vsub.s32 32, %v1414
        %v1416 = vshll.u32 %v1407, %v1414
        %v1417 = vshrl.u32 %v1399, %v1415
        %v1418 = vor.u32 %v1416, %v1417
        %v1419 = vsub.s32 4294967266, %v1414
        %v1420 = vadd.s32 %v1419, 127
        %v1421 = vshll.u32 %v1420, 23
        %v1422 = vor.u32 4788187, %v1421
        %v1423 = vand.u32 2147483647, %v1422
        %v1425 = vcvt.s32.f32 %v1418
        %v1426 = vmul.f32 %v1425, %v1423
        %v1427 = vxor.u32 %v1426, 2147483648
        %v1428 = vsel %vm1345, %v1427, %v1426
        %v1429 = vsub.s32 4, %v1405
        %v1430 = vsel %vm1345, %v1429, %v1405
        %v1431 = vsel %vm1344, %v1133, %v1428
        %v1432 = vsel %vm1344, 0, %v1430
        %v1433 = vcosq.f32.pop %v1431
        %v1434 = vsinq.f32.pop %v1431
        %vm1435 = vweird.f32 %v1133
        %v1436 = vadd.s32 %v1432, 3
        %v1437 = vand.u32 %v1436, 3
        %vm1438 = vcmp.lt.s32.totalorder %v1437, 2
        %vm1439 = vcmp.eq.s32.totalorder %v1437, 0
        %v1440 = vxor.u32 %v1434, 2147483648
        %v1441 = vsel %vm1439, %v1433, %v1440
        %vm1442 = vcmp.eq.s32.totalorder %v1437, 2
        %v1443 = vxor.u32 %v1433, 2147483648
        %v1444 = vsel %vm1442, %v1443, %v1434
        %v1445 = vsel %vm1438, %v1441, %v1444
        %v1446 = vsel %vm1435, nan, %v1445
        %v1447 = vand.u32 2147483647, %v1134
        %vm1448 = vcmp.le.f32.partialorder %v1447, 0.7853982
        %vm1449 = vcmp.lt.s32.totalorder %v1134, 0
        %v1450 = vand.u32 %v1134, 2139095040
        %v1451 = vshrl.u32 %v1450, 23
        %v1452 = vsub.s32 %v1451, 127
        %v1453 = vand.u32 2147483647, %v1134
        %v1454 = vand.u32 %v1453, 8388607
        %v1455 = vor.u32 %v1454, 8388608
        %v1456 = vsub.s32 0, %v1455
        %v1457 = vadd.s32 %v1452, 1
        %vm1458 = vcmp.gt.s32.totalorder %v1457, 0
        %v1459 = vsel %vm1458, %v1457, 0
        %v1460 = vshrl.u32 %v1459, 5
        %v1461 = vand.u32 %v1459, 31
        %v1462 = vsub.s32 32, %v1461
        %v1463 = vshrl.u32 683565275, %v1462
        %v1464 = vshll.u32 683565275, %v1461
        %v1465 = vshrl.u32 2475754826, %v1462
        %v1466 = vor.u32 %v1464, %v1465
        %v1467 = vshll.u32 2475754826, %v1461
        %v1468 = vshrl.u32 2131351028, %v1462
        %v1469 = vor.u32 %v1467, %v1468
        %v1470 = vshll.u32 2131351028, %v1461
        %v1471 = vshrl.u32 2102212464, %v1462
        %v1472 = vor.u32 %v1470, %v1471
        %v1473 = vshll.u32 2102212464, %v1461
        %v1474 = vshrl.u32 920167782, %v1462
        %v1475 = vor.u32 %v1473, %v1474
        %v1476 = vshll.u32 920167782, %v1461
        %v1477 = vshrl.u32 1326507024, %v1462
        %v1478 = vor.u32 %v1476, %v1477
        %vm1479 = vcmp.lt.s32.totalorder %v1460, 1
        %vm1480 = vcmp.lt.s32.totalorder %v1460, 2
        %vm1481 = vcmp.lt.s32.totalorder %v1460, 3
        %vm1482 = vcmp.lt.s32.totalorder %v1460, 4
        %v1483 = vsel %vm1479, %v1463, %v1466
        %v1484 = vsel %vm1482, %v1472, 2102212464
        %v1485 = vsel %vm1481, %v1469, %v1484
        %v1486 = vsel %vm1480, %v1483, %v1485
        %v1487 = vsel %vm1479, %v1466, %v1469
        %v1488 = vsel %vm1482, %v1475, 920167782
        %v1489 = vsel %vm1481, %v1472, %v1488
        %v1490 = vsel %vm1480, %v1487, %v1489
        %v1491 = vsel %vm1479, %v1469, %v1472
        %v1492 = vsel %vm1482, %v1478, 1326507024
        %v1493 = vsel %vm1481, %v1475, %v1492
        %v1494 = vsel %vm1480, %v1491, %v1493
        %v1495 = vshll.u32 %v1455, 8
        %v1496 = vmul.u32.u64.compose %v1495, %v1494
        %v1497 = vextract.low.u32 %v1496
        %v1498 = vextract.high.u32 %v1496
        %v1499 = vmul.u32.u64.compose %v1495, %v1490
        %v1500 = vextract.low.u32 %v1499
        %v1501 = vextract.high.u32 %v1499
        %v1502 = vmul.u32 %v1495, %v1486
        %v1503 = vadd.s32 %v1498, %v1500
        %vm1504 = vc.u32 %v1498, %v1500
        %v1505 = vadd.s32 %v1501, 1
        %v1506 = vsel %vm1504, %v1505, %v1501
        %v1507 = vadd.s32 %v1502, %v1506
        %v1508 = vadd.s32 %v1507, 536870912
        %v1509 = vshrl.u32 %v1508, 30
        %v1510 = vshll.u32 %v1509, 30
        %v1511 = vsub.s32 %v1507, %v1510
        %vm1512 = vcmp.lt.s32.totalorder %v1511, 0
        %v1513 = vsub.s32 0, %v1511
        %v1514 = vsel %vm1512, %v1513, %v1511
        %v1515 = vclz %v1514
        %v1516 = vsub.s32 %v1515, 2
        %vm1517 = vcmp.gt.s32.totalorder 0, %v1516
        %v1518 = vsel %vm1517, 0, %v1516
        %v1519 = vsub.s32 32, %v1518
        %v1520 = vshll.u32 %v1511, %v1518
        %v1521 = vshrl.u32 %v1503, %v1519
        %v1522 = vor.u32 %v1520, %v1521
        %v1523 = vsub.s32 4294967266, %v1518
        %v1524 = vadd.s32 %v1523, 127
        %v1525 = vshll.u32 %v1524, 23
        %v1526 = vor.u32 4788187, %v1525
        %v1527 = vand.u32 2147483647, %v1526
        %v1529 = vcvt.s32.f32 %v1522
        %v1530 = vmul.f32 %v1529, %v1527
        %v1531 = vxor.u32 %v1530, 2147483648
        %v1532 = vsel %vm1449, %v1531, %v1530
        %v1533 = vsub.s32 4, %v1509
        %v1534 = vsel %vm1449, %v1533, %v1509
        %v1535 = vsel %vm1448, %v1134, %v1532
        %v1536 = vsel %vm1448, 0, %v1534
        %v1537 = vcosq.f32.pop %v1535
        %v1538 = vsinq.f32.pop %v1535
        %vm1539 = vweird.f32 %v1134
        %v1540 = vadd.s32 %v1536, 3
        %v1541 = vand.u32 %v1540, 3
        %vm1542 = vcmp.lt.s32.totalorder %v1541, 2
        %vm1543 = vcmp.eq.s32.totalorder %v1541, 0
        %v1544 = vxor.u32 %v1538, 2147483648
        %v1545 = vsel %vm1543, %v1537, %v1544
        %vm1546 = vcmp.eq.s32.totalorder %v1541, 2
        %v1547 = vxor.u32 %v1537, 2147483648
        %v1548 = vsel %vm1546, %v1547, %v1538
        %v1549 = vsel %vm1542, %v1545, %v1548
        %v1550 = vsel %vm1539, nan, %v1549
        %v1552 = vsel %vm398, %v375, 0
        %1554 = vmatprep.subr.mxu0 0.0
        %1555 = vmatpush1.msra.mxu0 0.0
        %1556 = vmatprep.subr.mxu0 0.0
        %1557 = vmatpush1.msra.mxu0 0.0
        %1558 = vmatprep.subr.mxu0 0.0
        %1559 = vmatpush1.msra.mxu0 0.0
        %1560 = vmatprep.subr.mxu0 0.0
        %1561 = vmatpush1.msra.mxu0 0.0
        %1562 = vmatprep.subr.mxu0 0.0
        %1563 = vmatpush1.msra.mxu0 0.0
        %1564 = vmatprep.subr.mxu0 0.0
        %1565 = vmatpush1.msra.mxu0 0.0
        %1566 = vmatprep.subr.mxu0 0.0
        %1567 = vmatpush1.msra.mxu0 0.0
        %1568 = vmatprep.subr.mxu0 0.0
        %1569 = vmatpush1.msra.mxu0 0.0
        %1570 = vmatprep.subr.mxu0 0.0
        %1571 = vmatpush1.msra.mxu0 0.0
        %1572 = vmatprep.subr.mxu0 0.0
        %1573 = vmatpush1.msra.mxu0 0.0
        %1574 = vmatprep.subr.mxu0 0.0
        %1575 = vmatpush1.msra.mxu0 0.0
        %1576 = vmatprep.subr.mxu0 0.0
        %1577 = vmatpush1.msra.mxu0 0.0
        %1578 = vmatprep.subr.mxu0 0.0
        %1579 = vmatpush1.msra.mxu0 0.0
        %1580 = vmatprep.subr.mxu0 0.0
        %1581 = vmatpush1.msra.mxu0 0.0
        %1582 = vmatprep.subr.mxu0 0.0
        %1583 = vmatpush1.msra.mxu0 0.0
        %1584 = vmatprep.subr.mxu0 0.0
        %1585 = vmatpush1.msra.mxu0 %v413
        %1586 = vmatprep.subr.mxu0 0.0
        %1587 = vmatpush2.msra.mxu0 0.0
        %1588 = vmatprep.subr.mxu0 0.0
        %1589 = vmatpush2.msra.mxu0 0.0
        %1590 = vmatprep.subr.mxu0 0.0
        %1591 = vmatpush2.msra.mxu0 0.0
        %1592 = vmatprep.subr.mxu0 0.0
        %1593 = vmatpush2.msra.mxu0 0.0
        %1594 = vmatprep.subr.mxu0 0.0
        %1595 = vmatpush2.msra.mxu0 0.0
        %1596 = vmatprep.subr.mxu0 0.0
        %1597 = vmatpush2.msra.mxu0 0.0
        %1598 = vmatprep.subr.mxu0 0.0
        %1599 = vmatpush2.msra.mxu0 0.0
        %1600 = vmatprep.subr.mxu0 0.0
        %1601 = vmatpush2.msra.mxu0 0.0
        %1602 = vmatprep.subr.mxu0 0.0
        %1603 = vmatpush2.msra.mxu0 0.0
        %1604 = vmatprep.subr.mxu0 0.0
        %1605 = vmatpush2.msra.mxu0 0.0
        %1606 = vmatprep.subr.mxu0 0.0
        %1607 = vmatpush2.msra.mxu0 0.0
        %1608 = vmatprep.subr.mxu0 0.0
        %1609 = vmatpush2.msra.mxu0 0.0
        %1610 = vmatprep.subr.mxu0 0.0
        %1611 = vmatpush2.msra.mxu0 0.0
        %1612 = vmatprep.subr.mxu0 0.0
        %1613 = vmatpush2.msra.mxu0 0.0
        %1614 = vmatprep.subr.mxu0 0.0
        %1615 = vmatpush2.msra.mxu0 0.0
        %1616 = vmatprep.subr.mxu0 0.0
        %1617 = vmatpush2.msra.mxu0 0.0
        %1618 = vmatprep.mubr.f32.mxu0 0.0
        %1619 = vmatmul.mubr.f32.gmra.mxu0 %v1552
        %v1620 = vpop.f32.mrf.mxu0
        %v1621 = vadd.f32 0.0, %v1620
        %v1622 = vpop.f32.mrf.mxu0
        %1623 = vdwg.mxu0
        %v1625 = vsel %vm1013, %v374, 0
        %1627 = vmatprep.subr.mxu0 0.0
        %1628 = vmatpush1.msra.mxu0 0.0
        %1629 = vmatprep.subr.mxu0 0.0
        %1630 = vmatpush1.msra.mxu0 0.0
        %1631 = vmatprep.subr.mxu0 0.0
        %1632 = vmatpush1.msra.mxu0 0.0
        %1633 = vmatprep.subr.mxu0 0.0
        %1634 = vmatpush1.msra.mxu0 0.0
        %1635 = vmatprep.subr.mxu0 0.0
        %1636 = vmatpush1.msra.mxu0 0.0
        %1637 = vmatprep.subr.mxu0 0.0
        %1638 = vmatpush1.msra.mxu0 0.0
        %1639 = vmatprep.subr.mxu0 0.0
        %1640 = vmatpush1.msra.mxu0 0.0
        %1641 = vmatprep.subr.mxu0 0.0
        %1642 = vmatpush1.msra.mxu0 0.0
        %1643 = vmatprep.subr.mxu0 0.0
        %1644 = vmatpush1.msra.mxu0 0.0
        %1645 = vmatprep.subr.mxu0 0.0
        %1646 = vmatpush1.msra.mxu0 0.0
        %1647 = vmatprep.subr.mxu0 0.0
        %1648 = vmatpush1.msra.mxu0 0.0
        %1649 = vmatprep.subr.mxu0 0.0
        %1650 = vmatpush1.msra.mxu0 0.0
        %1651 = vmatprep.subr.mxu0 0.0
        %1652 = vmatpush1.msra.mxu0 %v1550
        %1653 = vmatprep.subr.mxu0 0.0
        %1654 = vmatpush1.msra.mxu0 %v1446
        %1655 = vmatprep.subr.mxu0 0.0
        %1656 = vmatpush1.msra.mxu0 %v1342
        %1657 = vmatprep.subr.mxu0 0.0
        %1658 = vmatpush1.msra.mxu0 %v1238
        %1659 = vmatprep.subr.mxu0 0.0
        %1660 = vmatpush2.msra.mxu0 0.0
        %1661 = vmatprep.subr.mxu0 0.0
        %1662 = vmatpush2.msra.mxu0 0.0
        %1663 = vmatprep.subr.mxu0 0.0
        %1664 = vmatpush2.msra.mxu0 0.0
        %1665 = vmatprep.subr.mxu0 0.0
        %1666 = vmatpush2.msra.mxu0 0.0
        %1667 = vmatprep.subr.mxu0 0.0
        %1668 = vmatpush2.msra.mxu0 0.0
        %1669 = vmatprep.subr.mxu0 0.0
        %1670 = vmatpush2.msra.mxu0 0.0
        %1671 = vmatprep.subr.mxu0 0.0
        %1672 = vmatpush2.msra.mxu0 0.0
        %1673 = vmatprep.subr.mxu0 0.0
        %1674 = vmatpush2.msra.mxu0 0.0
        %1675 = vmatprep.subr.mxu0 0.0
        %1676 = vmatpush2.msra.mxu0 0.0
        %1677 = vmatprep.subr.mxu0 0.0
        %1678 = vmatpush2.msra.mxu0 0.0
        %1679 = vmatprep.subr.mxu0 0.0
        %1680 = vmatpush2.msra.mxu0 0.0
        %1681 = vmatprep.subr.mxu0 0.0
        %1682 = vmatpush2.msra.mxu0 0.0
        %1683 = vmatprep.subr.mxu0 0.0
        %1684 = vmatpush2.msra.mxu0 0.0
        %1685 = vmatprep.subr.mxu0 0.0
        %1686 = vmatpush2.msra.mxu0 0.0
        %1687 = vmatprep.subr.mxu0 0.0
        %1688 = vmatpush2.msra.mxu0 0.0
        %1689 = vmatprep.subr.mxu0 0.0
        %1690 = vmatpush2.msra.mxu0 0.0
        %1691 = vmatprep.mubr.f32.mxu0 0.0
        %1692 = vmatmul.mubr.f32.gmra.mxu0 %v1625
        %v1693 = vpop.f32.mrf.mxu0
        %v1694 = vadd.f32 %v1621, %v1693
        %v1695 = vpop.f32.mrf.mxu0
        %1696 = vdwg.mxu0
        %1698 = vset.pattern.permute.xlu0 0
        %1699 = vperm.xlu0 %1698, %v376
        %v1700 = vpop.permute.xlu0 %1699
        %v1702 = vlaneseq
        %v1703 = vshrl.u32 %v1702, 7
        %v1704 = vsub.s32 0, %v1703
        %v1705 = vrot.slane %v1700, %v1704
        %v1706 = vadd.f32 %v1694, %v1705
        %vm1707 = vcmask 122880
        %1708 = vst.msk [vmem:[%s346] sm:$0x1] %vm1707, %v1706
        %s1709 = sand.u32 %s243, 1
        %s1710 = scalar_lea.sflag [#allocation4], %s1709
        %s1711 = sand.u32 %s243, 1
        %s1712 = scalar_lea.vmem [#allocation3], %s1711
        // Predicated region
        $region57: #{tpu_custom_call.1} parent=55 // pred_check
          %p1713 = pneg %p253
        $region58: #{tpu_custom_call.1} parent=55 // pred_check_branch
          %1715 = sbr.rel (%p1713) target = $region60
        $region59: #{tpu_custom_call.1} parent=55 // pred_region
          %s1717 = ssub.s32 16, 16
          %1718 = vsyncadd %s1710, %s1717
          %s1719 = sadd.s32 %s30, %s29
          %s1720 = smul.addr %s1719, 16
          %s1721 = scalar_lea.hbm %s9, %s1720
          %s1723 = sshll.u32 %s1712, 4
          %s1724 = int_to_ptr.vmem [resolvable:$true] %s1723
          %1726 = dma.vmem_to_hbm [thread:$0]  %s1724, 16, %s1721, %s1710
        $region60: #{tpu_custom_call.1} parent=55 // pred_fallthru
          _
      $region56: #{tpu_custom_call.1} parent=5 // pred_fallthru
        _
      %p1727 = scmp.le.s32.totalorder 2, %s20
      // Predicated region
      $region61: #{tpu_custom_call.1} parent=5 // pred_check
        %p1728 = pneg %p1727
      $region62: #{tpu_custom_call.1} parent=5 // pred_check_branch
        %1730 = sbr.rel (%p1728) target = $region64
      $region63: #{tpu_custom_call.1} parent=5 // pred_region
        %s1731 = ssub.s32 %s20, 2
        // Predicated region
        $region65: #{tpu_custom_call.1} parent=63 // pred_check
          %p1732 = pneg %p259
        $region66: #{tpu_custom_call.1} parent=63 // pred_check_branch
          %1734 = sbr.rel (%p1732) target = $region68
        $region67: #{tpu_custom_call.1} parent=63 // pred_region
          %s1735 = sand.u32 %s244, 1
          %s1736 = scalar_lea.sflag [#allocation4], %s1735
          %s1737 = sand.u32 %s244, 1
          %s1738 = scalar_lea.vmem [#allocation3], %s1737
          %1739 = dma.done %s1736, 16
        $region68: #{tpu_custom_call.1} parent=63 // pred_fallthru
          _
      $region64: #{tpu_custom_call.1} parent=5 // pred_fallthru
        _
    $region6: #{tpu_custom_call.1} parent=1 // loop_footer
      %s24 = sadd.s32 1, %s20
    $region7: #{tpu_custom_call.1} parent=1 // loop_footer_branch
      %19 = sbr.rel target = $region3
    $region8: #{tpu_custom_call.1} parent=1 // loop_exit
      _
    %1740 = vsyncpa [#allocation4], 1
    %s1741 = scalar_lea.sflag [#allocation4], 1
    %1742 = vsyncpa %s1741, 1

</llo_original>
